<compile_context>
chip_gen: v5e
topology: v5e:2x2
jax: 0.10.0
libtpu: 0.0.40
codegen_flags: <defaults>
</compile_context>

<pallas_src>
import functools

import jax
import jax.numpy as jnp
from jax import lax
from jax.experimental import pallas as pl
from jax.experimental.pallas import tpu as pltpu


def _embedding_kernel(x_ids,       # SMEM (B, S) int32  — scalar-prefetched token ids
                      tok_hbm,     # HBM  (V, D)        — token table, manual row gather
                      pos_ref,     # VMEM (TS, D)       — positional rows of this tile
                      seg_ref,     # VMEM (1, TS, 1) i32 — segment ids of this tile
                      segtab_ref,  # VMEM (n_seg, D)    — segment table (resident)
                      gamma_ref,   # VMEM (1, D)
                      beta_ref,    # VMEM (1, D)
                      out_ref,     # VMEM (1, TS, D)
                      tok_buf,     # VMEM (2, TS, D)    — double-buffered gathered rows
                      sem,         # DMA sems (2,)      — one per slot
                      *, eps):
    t = pl.program_id(0)
    b = pl.program_id(1)
    n_b = pl.num_programs(1)
    total = pl.num_programs(0) * n_b
    ts = tok_buf.shape[1]

    step = t * n_b + b
    slot = lax.rem(step, 2)

    # ---- Token-row gather: issue HBM -> VMEM DMAs for a given (tile, batch).
    def issue_rows(tt, bb, sl):
        s0 = tt * ts

        def body(i, carry):
            tid = x_ids[bb, s0 + i]
            pltpu.make_async_copy(tok_hbm.at[pl.ds(tid, 1), :],
                                  tok_buf.at[sl, pl.ds(i, 1), :],
                                  sem.at[sl]).start()
            return carry

        lax.fori_loop(0, ts, body, 0, unroll=8)

    # First step only: gather this tile's rows (later tiles were prefetched).
    @pl.when(step == 0)
    def _():
        issue_rows(t, b, slot)

    # Prefetch the NEXT tile's token rows into the other slot so the gather
    # latency hides behind this tile's compute + output writeback.
    @pl.when(step + 1 < total)
    def _():
        nb = b + 1
        wrap = nb == n_b
        nt = t + jnp.where(wrap, 1, 0)
        nb = jnp.where(wrap, 0, nb)
        issue_rows(nt, nb, 1 - slot)

    # ---- Segment embedding: in-kernel one-hot + one (otherwise idle) MXU matmul.
    seg_col = seg_ref[0]                                       # (TS, 1) int32
    n_seg = segtab_ref.shape[0]
    oh = (seg_col == lax.broadcasted_iota(jnp.int32, (ts, n_seg), 1)
          ).astype(segtab_ref.dtype)                           # (TS, n_seg)
    seg_emb = jnp.dot(oh, segtab_ref[...],
                      preferred_element_type=jnp.float32)      # (TS, D)
    base = pos_ref[...].astype(jnp.float32) + seg_emb          # (TS, D)

    # ---- Wait for this tile's gathered token rows (issued one step earlier,
    #      or just above on step 0).  Exact descriptors, shared slot semaphore.
    s0 = t * ts

    def wait_body(i, carry):
        tid = x_ids[b, s0 + i]
        pltpu.make_async_copy(tok_hbm.at[pl.ds(tid, 1), :],
                              tok_buf.at[slot, pl.ds(i, 1), :],
                              sem.at[slot]).wait()
        return carry

    lax.fori_loop(0, ts, wait_body, 0, unroll=8)

    emb = base + tok_buf[slot].astype(jnp.float32)             # (TS, D)

    # ---- LayerNorm over features (biased variance + eps, torch default).
    mean = jnp.mean(emb, axis=-1, keepdims=True)
    c = emb - mean
    var = jnp.mean(c * c, axis=-1, keepdims=True)
    y = c * lax.rsqrt(var + eps) * gamma_ref[...] + beta_ref[...]

    out_ref[0] = y.astype(out_ref.dtype)


def bert_embedding(x, seg, tok_embed, pos_embed, seg_embed, gamma, beta,
                   *, seq_tile=None, eps=1e-5):
    B, S = x.shape
    V, D = tok_embed.shape
    maxlen = pos_embed.shape[0]
    n_seg = seg_embed.shape[0]
    assert S <= maxlen
    assert D % 128 == 0, "d_model must be a multiple of 128 for lane-dense tiles"

    if seq_tile is None:
        seq_tile = min(S, 256)          # bigger tiles amortize per-step overhead
    ts = seq_tile
    assert S % ts == 0, "seq length must be divisible by the sequence tile"
    assert ts % 8 == 0, "sequence tile must be a multiple of 8"

    x = x.astype(jnp.int32)
    seg3 = seg.astype(jnp.int32).reshape(B, S, 1)   # tiny id stream, no host one-hot

    kernel = functools.partial(_embedding_kernel, eps=eps)

    grid_spec = pltpu.PrefetchScalarGridSpec(
        num_scalar_prefetch=1,                      # token ids -> SMEM
        grid=(S // ts, B),                          # batch innermost: pos tile reused
        in_specs=[
            # token table stays in HBM; rows gathered with manual async DMAs
            pl.BlockSpec(memory_space=pl.ANY),
            # positional rows for this sequence tile (constant across b)
            pl.BlockSpec((ts, D), lambda t, b, xi: (t, 0)),
            # per-position segment ids for this tile
            pl.BlockSpec((1, ts, 1), lambda t, b, xi: (b, t, 0)),
            # tiny resident segment table
            pl.BlockSpec((n_seg, D), lambda t, b, xi: (0, 0)),
            pl.BlockSpec((1, D), lambda t, b, xi: (0, 0)),
            pl.BlockSpec((1, D), lambda t, b, xi: (0, 0)),
        ],
        out_specs=pl.BlockSpec((1, ts, D), lambda t, b, xi: (b, t, 0)),
        scratch_shapes=[
            pltpu.VMEM((2, ts, D), tok_embed.dtype),   # double-buffered token rows
            pltpu.SemaphoreType.DMA((2,)),             # one semaphore per slot
        ],
    )

    return pl.pallas_call(
        kernel,
        out_shape=jax.ShapeDtypeStruct((B, S, D), tok_embed.dtype),
        grid_spec=grid_spec,
        compiler_params=pltpu.CompilerParams(
            # cross-step token prefetch requires sequential grid execution
            dimension_semantics=("arbitrary", "arbitrary"),
            vmem_limit_bytes=48 * 1024 * 1024),        # under v7x's 64 MiB physical
    )(x, tok_embed, pos_embed, seg3, seg_embed,
      gamma.reshape(1, D), beta.reshape(1, D))


def _reference(x, seg, tok_embed, pos_embed, seg_embed, gamma, beta, eps=1e-5):
    S = x.shape[1]
    pos = jnp.arange(S, dtype=jnp.int32)[None, :]
    emb = tok_embed[x] + pos_embed[pos] + seg_embed[seg]
    mean = emb.mean(-1, keepdims=True)
    var = ((emb - mean) ** 2).mean(-1, keepdims=True)
    return (emb - mean) * lax.rsqrt(var + eps) * gamma + beta


if __name__ == "__main__":
    # Small synthetic sizes consistent with the module (D kept lane-dense).
    vocab_size = 64
    d_model = 128
    maxlen = 64
    n_segments = 2
    B, S = 2, 32
    TS = 8                      # four sequence tiles per batch row -> 8 grid steps

    key = jax.random.PRNGKey(0)
    k_tok, k_pos, k_seg, k_x, k_s = jax.random.split(key, 5)

    tok_embed = jax.random.normal(k_tok, (vocab_size, d_model), jnp.float32)
    pos_embed = jax.random.normal(k_pos, (maxlen, d_model), jnp.float32)
    seg_embed = jax.random.normal(k_seg, (n_segments, d_model), jnp.float32)
    # nn.LayerNorm default init: weight=1, bias=0
    gamma = jnp.ones((d_model,), jnp.float32)
    beta = jnp.zeros((d_model,), jnp.float32)

    x = jax.random.randint(k_x, (B, S), 0, vocab_size, dtype=jnp.int32)
    seg = jax.random.randint(k_s, (B, S), 0, n_segments, dtype=jnp.int32)

    out = bert_embedding(x, seg, tok_embed, pos_embed, seg_embed, gamma, beta,
                         seq_tile=TS)
    out = jax.block_until_ready(out)

    ref = _reference(x, seg, tok_embed, pos_embed, seg_embed, gamma, beta)
    assert out.shape == (B, S, d_model)
    assert jnp.allclose(out, ref, atol=1e-5, rtol=1e-5)

    print("KERNEL_OK")
</pallas_src>

<mosaic_0001>
module attributes {stable_mosaic.version = 11 : i64} {
  func.func @_embedding_kernel(%arg0: i32, %arg1: i32, %arg2: memref<2x32xi32, #tpu.memory_space<smem>>, %arg3: memref<64x128xf32, #tpu.memory_space<any>>, %arg4: memref<8x128xf32, #tpu.memory_space<vmem>>, %arg5: memref<1x8x1xi32, #tpu.memory_space<vmem>>, %arg6: memref<2x128xf32, #tpu.memory_space<vmem>>, %arg7: memref<1x128xf32, #tpu.memory_space<vmem>>, %arg8: memref<1x128xf32, #tpu.memory_space<vmem>>, %arg9: memref<1x8x128xf32, #tpu.memory_space<vmem>>, %arg10: memref<2x8x128xf32, #tpu.memory_space<vmem>>, %arg11: memref<2x!tpu.dma_semaphore, #tpu.memory_space<semaphore_mem>>) attributes {dimension_semantics = [#tpu.dimension_semantics<arbitrary>, #tpu.dimension_semantics<arbitrary>], iteration_bounds = array<i64: 4, 2>, scalar_prefetch = 1 : i64, scratch_operands = 2 : i64, tpu.core_type = #tpu.core_type<tc>, window_params = [{}, {transform_indices = @transform_1, window_bounds = array<i64: 8, 128>}, {transform_indices = @transform_2, window_bounds = array<i64: 1, 8, 1>}, {pipeline_mode = #tpu.pipeline_mode<synchronous>, transform_indices = @transform_3, window_bounds = array<i64: 2, 128>}, {pipeline_mode = #tpu.pipeline_mode<synchronous>, transform_indices = @transform_4, window_bounds = array<i64: 1, 128>}, {pipeline_mode = #tpu.pipeline_mode<synchronous>, transform_indices = @transform_5, window_bounds = array<i64: 1, 128>}, {transform_indices = @transform_6, window_bounds = array<i64: 1, 8, 128>}]} {
    %c2_i32 = arith.constant 2 : i32
    %0 = arith.muli %arg0, %c2_i32 : i32
    %1 = arith.addi %0, %arg1 : i32
    %c2_i32_0 = arith.constant 2 : i32
    %2 = arith.remsi %1, %c2_i32_0 : i32
    %c0_i32 = arith.constant 0 : i32
    %3 = arith.cmpi eq, %1, %c0_i32 : i32
    %4 = arith.extui %3 : i1 to i32
    %c0_i32_1 = arith.constant 0 : i32
    %5 = arith.cmpi ne, %4, %c0_i32_1 : i32
    scf.if %5 {
      %c8_i32_44 = arith.constant 8 : i32
      %123 = arith.muli %arg0, %c8_i32_44 : i32
      %c0_i32_45 = arith.constant 0 : i32
      %124 = arith.addi %123, %c0_i32_45 : i32
      %125 = arith.index_cast %arg1 : i32 to index
      %126 = arith.index_cast %124 : i32 to index
      %127 = memref.load %arg2[%125, %126] : memref<2x32xi32, #tpu.memory_space<smem>>
      %c0_i32_46 = arith.constant 0 : i32
      %128 = tpu.memref_slice %arg3[%127, %c0_i32_46] : memref<64x128xf32, #tpu.memory_space<any>> -> memref<1x128xf32, #tpu.memory_space<any>>
      %c0_i32_47 = arith.constant 0 : i32
      %129 = tpu.memref_slice %arg10[%2, %c0_i32_45, %c0_i32_47] : memref<2x8x128xf32, #tpu.memory_space<vmem>> -> memref<1x1x128xf32, #tpu.memory_space<vmem>>
      %130 = tpu.memref_squeeze %129 : memref<1x1x128xf32, #tpu.memory_space<vmem>> -> memref<1x128xf32, #tpu.memory_space<vmem>>
      %131 = tpu.memref_slice %arg11[%2] : memref<2x!tpu.dma_semaphore, #tpu.memory_space<semaphore_mem>> -> memref<1x!tpu.dma_semaphore, #tpu.memory_space<semaphore_mem>>
      %132 = tpu.memref_squeeze %131 : memref<1x!tpu.dma_semaphore, #tpu.memory_space<semaphore_mem>> -> memref<!tpu.dma_semaphore, #tpu.memory_space<semaphore_mem>>
      tpu.enqueue_dma source(%128 : memref<1x128xf32, #tpu.memory_space<any>>) target(%130 : memref<1x128xf32, #tpu.memory_space<vmem>>) target_semaphore(%132 : memref<!tpu.dma_semaphore, #tpu.memory_space<semaphore_mem>>)
      %c1_i32_48 = arith.constant 1 : i32
      %133 = arith.addi %123, %c1_i32_48 : i32
      %134 = arith.index_cast %arg1 : i32 to index
      %135 = arith.index_cast %133 : i32 to index
      %136 = memref.load %arg2[%134, %135] : memref<2x32xi32, #tpu.memory_space<smem>>
      %c0_i32_49 = arith.constant 0 : i32
      %137 = tpu.memref_slice %arg3[%136, %c0_i32_49] : memref<64x128xf32, #tpu.memory_space<any>> -> memref<1x128xf32, #tpu.memory_space<any>>
      %c0_i32_50 = arith.constant 0 : i32
      %138 = tpu.memref_slice %arg10[%2, %c1_i32_48, %c0_i32_50] : memref<2x8x128xf32, #tpu.memory_space<vmem>> -> memref<1x1x128xf32, #tpu.memory_space<vmem>>
      %139 = tpu.memref_squeeze %138 : memref<1x1x128xf32, #tpu.memory_space<vmem>> -> memref<1x128xf32, #tpu.memory_space<vmem>>
      %140 = tpu.memref_slice %arg11[%2] : memref<2x!tpu.dma_semaphore, #tpu.memory_space<semaphore_mem>> -> memref<1x!tpu.dma_semaphore, #tpu.memory_space<semaphore_mem>>
      %141 = tpu.memref_squeeze %140 : memref<1x!tpu.dma_semaphore, #tpu.memory_space<semaphore_mem>> -> memref<!tpu.dma_semaphore, #tpu.memory_space<semaphore_mem>>
      tpu.enqueue_dma source(%137 : memref<1x128xf32, #tpu.memory_space<any>>) target(%139 : memref<1x128xf32, #tpu.memory_space<vmem>>) target_semaphore(%141 : memref<!tpu.dma_semaphore, #tpu.memory_space<semaphore_mem>>)
      %c2_i32_51 = arith.constant 2 : i32
      %142 = arith.addi %123, %c2_i32_51 : i32
      %143 = arith.index_cast %arg1 : i32 to index
      %144 = arith.index_cast %142 : i32 to index
      %145 = memref.load %arg2[%143, %144] : memref<2x32xi32, #tpu.memory_space<smem>>
      %c0_i32_52 = arith.constant 0 : i32
      %146 = tpu.memref_slice %arg3[%145, %c0_i32_52] : memref<64x128xf32, #tpu.memory_space<any>> -> memref<1x128xf32, #tpu.memory_space<any>>
      %c0_i32_53 = arith.constant 0 : i32
      %147 = tpu.memref_slice %arg10[%2, %c2_i32_51, %c0_i32_53] : memref<2x8x128xf32, #tpu.memory_space<vmem>> -> memref<1x1x128xf32, #tpu.memory_space<vmem>>
      %148 = tpu.memref_squeeze %147 : memref<1x1x128xf32, #tpu.memory_space<vmem>> -> memref<1x128xf32, #tpu.memory_space<vmem>>
      %149 = tpu.memref_slice %arg11[%2] : memref<2x!tpu.dma_semaphore, #tpu.memory_space<semaphore_mem>> -> memref<1x!tpu.dma_semaphore, #tpu.memory_space<semaphore_mem>>
      %150 = tpu.memref_squeeze %149 : memref<1x!tpu.dma_semaphore, #tpu.memory_space<semaphore_mem>> -> memref<!tpu.dma_semaphore, #tpu.memory_space<semaphore_mem>>
      tpu.enqueue_dma source(%146 : memref<1x128xf32, #tpu.memory_space<any>>) target(%148 : memref<1x128xf32, #tpu.memory_space<vmem>>) target_semaphore(%150 : memref<!tpu.dma_semaphore, #tpu.memory_space<semaphore_mem>>)
      %c3_i32_54 = arith.constant 3 : i32
      %151 = arith.addi %123, %c3_i32_54 : i32
      %152 = arith.index_cast %arg1 : i32 to index
      %153 = arith.index_cast %151 : i32 to index
      %154 = memref.load %arg2[%152, %153] : memref<2x32xi32, #tpu.memory_space<smem>>
      %c0_i32_55 = arith.constant 0 : i32
      %155 = tpu.memref_slice %arg3[%154, %c0_i32_55] : memref<64x128xf32, #tpu.memory_space<any>> -> memref<1x128xf32, #tpu.memory_space<any>>
      %c0_i32_56 = arith.constant 0 : i32
      %156 = tpu.memref_slice %arg10[%2, %c3_i32_54, %c0_i32_56] : memref<2x8x128xf32, #tpu.memory_space<vmem>> -> memref<1x1x128xf32, #tpu.memory_space<vmem>>
      %157 = tpu.memref_squeeze %156 : memref<1x1x128xf32, #tpu.memory_space<vmem>> -> memref<1x128xf32, #tpu.memory_space<vmem>>
      %158 = tpu.memref_slice %arg11[%2] : memref<2x!tpu.dma_semaphore, #tpu.memory_space<semaphore_mem>> -> memref<1x!tpu.dma_semaphore, #tpu.memory_space<semaphore_mem>>
      %159 = tpu.memref_squeeze %158 : memref<1x!tpu.dma_semaphore, #tpu.memory_space<semaphore_mem>> -> memref<!tpu.dma_semaphore, #tpu.memory_space<semaphore_mem>>
      tpu.enqueue_dma source(%155 : memref<1x128xf32, #tpu.memory_space<any>>) target(%157 : memref<1x128xf32, #tpu.memory_space<vmem>>) target_semaphore(%159 : memref<!tpu.dma_semaphore, #tpu.memory_space<semaphore_mem>>)
      %c4_i32_57 = arith.constant 4 : i32
      %160 = arith.addi %123, %c4_i32_57 : i32
      %161 = arith.index_cast %arg1 : i32 to index
      %162 = arith.index_cast %160 : i32 to index
      %163 = memref.load %arg2[%161, %162] : memref<2x32xi32, #tpu.memory_space<smem>>
      %c0_i32_58 = arith.constant 0 : i32
      %164 = tpu.memref_slice %arg3[%163, %c0_i32_58] : memref<64x128xf32, #tpu.memory_space<any>> -> memref<1x128xf32, #tpu.memory_space<any>>
      %c0_i32_59 = arith.constant 0 : i32
      %165 = tpu.memref_slice %arg10[%2, %c4_i32_57, %c0_i32_59] : memref<2x8x128xf32, #tpu.memory_space<vmem>> -> memref<1x1x128xf32, #tpu.memory_space<vmem>>
      %166 = tpu.memref_squeeze %165 : memref<1x1x128xf32, #tpu.memory_space<vmem>> -> memref<1x128xf32, #tpu.memory_space<vmem>>
      %167 = tpu.memref_slice %arg11[%2] : memref<2x!tpu.dma_semaphore, #tpu.memory_space<semaphore_mem>> -> memref<1x!tpu.dma_semaphore, #tpu.memory_space<semaphore_mem>>
      %168 = tpu.memref_squeeze %167 : memref<1x!tpu.dma_semaphore, #tpu.memory_space<semaphore_mem>> -> memref<!tpu.dma_semaphore, #tpu.memory_space<semaphore_mem>>
      tpu.enqueue_dma source(%164 : memref<1x128xf32, #tpu.memory_space<any>>) target(%166 : memref<1x128xf32, #tpu.memory_space<vmem>>) target_semaphore(%168 : memref<!tpu.dma_semaphore, #tpu.memory_space<semaphore_mem>>)
      %c5_i32_60 = arith.constant 5 : i32
      %169 = arith.addi %123, %c5_i32_60 : i32
      %170 = arith.index_cast %arg1 : i32 to index
      %171 = arith.index_cast %169 : i32 to index
      %172 = memref.load %arg2[%170, %171] : memref<2x32xi32, #tpu.memory_space<smem>>
      %c0_i32_61 = arith.constant 0 : i32
      %173 = tpu.memref_slice %arg3[%172, %c0_i32_61] : memref<64x128xf32, #tpu.memory_space<any>> -> memref<1x128xf32, #tpu.memory_space<any>>
      %c0_i32_62 = arith.constant 0 : i32
      %174 = tpu.memref_slice %arg10[%2, %c5_i32_60, %c0_i32_62] : memref<2x8x128xf32, #tpu.memory_space<vmem>> -> memref<1x1x128xf32, #tpu.memory_space<vmem>>
      %175 = tpu.memref_squeeze %174 : memref<1x1x128xf32, #tpu.memory_space<vmem>> -> memref<1x128xf32, #tpu.memory_space<vmem>>
      %176 = tpu.memref_slice %arg11[%2] : memref<2x!tpu.dma_semaphore, #tpu.memory_space<semaphore_mem>> -> memref<1x!tpu.dma_semaphore, #tpu.memory_space<semaphore_mem>>
      %177 = tpu.memref_squeeze %176 : memref<1x!tpu.dma_semaphore, #tpu.memory_space<semaphore_mem>> -> memref<!tpu.dma_semaphore, #tpu.memory_space<semaphore_mem>>
      tpu.enqueue_dma source(%173 : memref<1x128xf32, #tpu.memory_space<any>>) target(%175 : memref<1x128xf32, #tpu.memory_space<vmem>>) target_semaphore(%177 : memref<!tpu.dma_semaphore, #tpu.memory_space<semaphore_mem>>)
      %c6_i32_63 = arith.constant 6 : i32
      %178 = arith.addi %123, %c6_i32_63 : i32
      %179 = arith.index_cast %arg1 : i32 to index
      %180 = arith.index_cast %178 : i32 to index
      %181 = memref.load %arg2[%179, %180] : memref<2x32xi32, #tpu.memory_space<smem>>
      %c0_i32_64 = arith.constant 0 : i32
      %182 = tpu.memref_slice %arg3[%181, %c0_i32_64] : memref<64x128xf32, #tpu.memory_space<any>> -> memref<1x128xf32, #tpu.memory_space<any>>
      %c0_i32_65 = arith.constant 0 : i32
      %183 = tpu.memref_slice %arg10[%2, %c6_i32_63, %c0_i32_65] : memref<2x8x128xf32, #tpu.memory_space<vmem>> -> memref<1x1x128xf32, #tpu.memory_space<vmem>>
      %184 = tpu.memref_squeeze %183 : memref<1x1x128xf32, #tpu.memory_space<vmem>> -> memref<1x128xf32, #tpu.memory_space<vmem>>
      %185 = tpu.memref_slice %arg11[%2] : memref<2x!tpu.dma_semaphore, #tpu.memory_space<semaphore_mem>> -> memref<1x!tpu.dma_semaphore, #tpu.memory_space<semaphore_mem>>
      %186 = tpu.memref_squeeze %185 : memref<1x!tpu.dma_semaphore, #tpu.memory_space<semaphore_mem>> -> memref<!tpu.dma_semaphore, #tpu.memory_space<semaphore_mem>>
      tpu.enqueue_dma source(%182 : memref<1x128xf32, #tpu.memory_space<any>>) target(%184 : memref<1x128xf32, #tpu.memory_space<vmem>>) target_semaphore(%186 : memref<!tpu.dma_semaphore, #tpu.memory_space<semaphore_mem>>)
      %c7_i32_66 = arith.constant 7 : i32
      %187 = arith.addi %123, %c7_i32_66 : i32
      %188 = arith.index_cast %arg1 : i32 to index
      %189 = arith.index_cast %187 : i32 to index
      %190 = memref.load %arg2[%188, %189] : memref<2x32xi32, #tpu.memory_space<smem>>
      %c0_i32_67 = arith.constant 0 : i32
      %191 = tpu.memref_slice %arg3[%190, %c0_i32_67] : memref<64x128xf32, #tpu.memory_space<any>> -> memref<1x128xf32, #tpu.memory_space<any>>
      %c0_i32_68 = arith.constant 0 : i32
      %192 = tpu.memref_slice %arg10[%2, %c7_i32_66, %c0_i32_68] : memref<2x8x128xf32, #tpu.memory_space<vmem>> -> memref<1x1x128xf32, #tpu.memory_space<vmem>>
      %193 = tpu.memref_squeeze %192 : memref<1x1x128xf32, #tpu.memory_space<vmem>> -> memref<1x128xf32, #tpu.memory_space<vmem>>
      %194 = tpu.memref_slice %arg11[%2] : memref<2x!tpu.dma_semaphore, #tpu.memory_space<semaphore_mem>> -> memref<1x!tpu.dma_semaphore, #tpu.memory_space<semaphore_mem>>
      %195 = tpu.memref_squeeze %194 : memref<1x!tpu.dma_semaphore, #tpu.memory_space<semaphore_mem>> -> memref<!tpu.dma_semaphore, #tpu.memory_space<semaphore_mem>>
      tpu.enqueue_dma source(%191 : memref<1x128xf32, #tpu.memory_space<any>>) target(%193 : memref<1x128xf32, #tpu.memory_space<vmem>>) target_semaphore(%195 : memref<!tpu.dma_semaphore, #tpu.memory_space<semaphore_mem>>)
      %c8_i32_69 = arith.constant 8 : i32
    } else {
    }
    %c1_i32 = arith.constant 1 : i32
    %6 = arith.addi %1, %c1_i32 : i32
    %c8_i32 = arith.constant 8 : i32
    %7 = arith.cmpi slt, %6, %c8_i32 : i32
    %8 = arith.extui %7 : i1 to i32
    %c0_i32_2 = arith.constant 0 : i32
    %9 = arith.cmpi ne, %8, %c0_i32_2 : i32
    scf.if %9 {
      %c1_i32_44 = arith.constant 1 : i32
      %123 = arith.addi %arg1, %c1_i32_44 : i32
      %c2_i32_45 = arith.constant 2 : i32
      %124 = arith.cmpi eq, %123, %c2_i32_45 : i32
      %c1_i32_46 = arith.constant 1 : i32
      %c0_i32_47 = arith.constant 0 : i32
      %125 = arith.select %124, %c1_i32_46, %c0_i32_47 : i32
      %126 = arith.addi %arg0, %125 : i32
      %c0_i32_48 = arith.constant 0 : i32
      %127 = arith.select %124, %c0_i32_48, %123 : i32
      %c1_i32_49 = arith.constant 1 : i32
      %128 = arith.subi %c1_i32_49, %2 : i32
      %c8_i32_50 = arith.constant 8 : i32
      %129 = arith.muli %126, %c8_i32_50 : i32
      %c0_i32_51 = arith.constant 0 : i32
      %130 = arith.addi %129, %c0_i32_51 : i32
      %131 = arith.index_cast %127 : i32 to index
      %132 = arith.index_cast %130 : i32 to index
      %133 = memref.load %arg2[%131, %132] : memref<2x32xi32, #tpu.memory_space<smem>>
      %c0_i32_52 = arith.constant 0 : i32
      %134 = tpu.memref_slice %arg3[%133, %c0_i32_52] : memref<64x128xf32, #tpu.memory_space<any>> -> memref<1x128xf32, #tpu.memory_space<any>>
      %c0_i32_53 = arith.constant 0 : i32
      %135 = tpu.memref_slice %arg10[%128, %c0_i32_51, %c0_i32_53] : memref<2x8x128xf32, #tpu.memory_space<vmem>> -> memref<1x1x128xf32, #tpu.memory_space<vmem>>
      %136 = tpu.memref_squeeze %135 : memref<1x1x128xf32, #tpu.memory_space<vmem>> -> memref<1x128xf32, #tpu.memory_space<vmem>>
      %137 = tpu.memref_slice %arg11[%128] : memref<2x!tpu.dma_semaphore, #tpu.memory_space<semaphore_mem>> -> memref<1x!tpu.dma_semaphore, #tpu.memory_space<semaphore_mem>>
      %138 = tpu.memref_squeeze %137 : memref<1x!tpu.dma_semaphore, #tpu.memory_space<semaphore_mem>> -> memref<!tpu.dma_semaphore, #tpu.memory_space<semaphore_mem>>
      tpu.enqueue_dma source(%134 : memref<1x128xf32, #tpu.memory_space<any>>) target(%136 : memref<1x128xf32, #tpu.memory_space<vmem>>) target_semaphore(%138 : memref<!tpu.dma_semaphore, #tpu.memory_space<semaphore_mem>>)
      %c1_i32_54 = arith.constant 1 : i32
      %139 = arith.addi %129, %c1_i32_54 : i32
      %140 = arith.index_cast %127 : i32 to index
      %141 = arith.index_cast %139 : i32 to index
      %142 = memref.load %arg2[%140, %141] : memref<2x32xi32, #tpu.memory_space<smem>>
      %c0_i32_55 = arith.constant 0 : i32
      %143 = tpu.memref_slice %arg3[%142, %c0_i32_55] : memref<64x128xf32, #tpu.memory_space<any>> -> memref<1x128xf32, #tpu.memory_space<any>>
      %c0_i32_56 = arith.constant 0 : i32
      %144 = tpu.memref_slice %arg10[%128, %c1_i32_54, %c0_i32_56] : memref<2x8x128xf32, #tpu.memory_space<vmem>> -> memref<1x1x128xf32, #tpu.memory_space<vmem>>
      %145 = tpu.memref_squeeze %144 : memref<1x1x128xf32, #tpu.memory_space<vmem>> -> memref<1x128xf32, #tpu.memory_space<vmem>>
      %146 = tpu.memref_slice %arg11[%128] : memref<2x!tpu.dma_semaphore, #tpu.memory_space<semaphore_mem>> -> memref<1x!tpu.dma_semaphore, #tpu.memory_space<semaphore_mem>>
      %147 = tpu.memref_squeeze %146 : memref<1x!tpu.dma_semaphore, #tpu.memory_space<semaphore_mem>> -> memref<!tpu.dma_semaphore, #tpu.memory_space<semaphore_mem>>
      tpu.enqueue_dma source(%143 : memref<1x128xf32, #tpu.memory_space<any>>) target(%145 : memref<1x128xf32, #tpu.memory_space<vmem>>) target_semaphore(%147 : memref<!tpu.dma_semaphore, #tpu.memory_space<semaphore_mem>>)
      %c2_i32_57 = arith.constant 2 : i32
      %148 = arith.addi %129, %c2_i32_57 : i32
      %149 = arith.index_cast %127 : i32 to index
      %150 = arith.index_cast %148 : i32 to index
      %151 = memref.load %arg2[%149, %150] : memref<2x32xi32, #tpu.memory_space<smem>>
      %c0_i32_58 = arith.constant 0 : i32
      %152 = tpu.memref_slice %arg3[%151, %c0_i32_58] : memref<64x128xf32, #tpu.memory_space<any>> -> memref<1x128xf32, #tpu.memory_space<any>>
      %c0_i32_59 = arith.constant 0 : i32
      %153 = tpu.memref_slice %arg10[%128, %c2_i32_57, %c0_i32_59] : memref<2x8x128xf32, #tpu.memory_space<vmem>> -> memref<1x1x128xf32, #tpu.memory_space<vmem>>
      %154 = tpu.memref_squeeze %153 : memref<1x1x128xf32, #tpu.memory_space<vmem>> -> memref<1x128xf32, #tpu.memory_space<vmem>>
      %155 = tpu.memref_slice %arg11[%128] : memref<2x!tpu.dma_semaphore, #tpu.memory_space<semaphore_mem>> -> memref<1x!tpu.dma_semaphore, #tpu.memory_space<semaphore_mem>>
      %156 = tpu.memref_squeeze %155 : memref<1x!tpu.dma_semaphore, #tpu.memory_space<semaphore_mem>> -> memref<!tpu.dma_semaphore, #tpu.memory_space<semaphore_mem>>
      tpu.enqueue_dma source(%152 : memref<1x128xf32, #tpu.memory_space<any>>) target(%154 : memref<1x128xf32, #tpu.memory_space<vmem>>) target_semaphore(%156 : memref<!tpu.dma_semaphore, #tpu.memory_space<semaphore_mem>>)
      %c3_i32_60 = arith.constant 3 : i32
      %157 = arith.addi %129, %c3_i32_60 : i32
      %158 = arith.index_cast %127 : i32 to index
      %159 = arith.index_cast %157 : i32 to index
      %160 = memref.load %arg2[%158, %159] : memref<2x32xi32, #tpu.memory_space<smem>>
      %c0_i32_61 = arith.constant 0 : i32
      %161 = tpu.memref_slice %arg3[%160, %c0_i32_61] : memref<64x128xf32, #tpu.memory_space<any>> -> memref<1x128xf32, #tpu.memory_space<any>>
      %c0_i32_62 = arith.constant 0 : i32
      %162 = tpu.memref_slice %arg10[%128, %c3_i32_60, %c0_i32_62] : memref<2x8x128xf32, #tpu.memory_space<vmem>> -> memref<1x1x128xf32, #tpu.memory_space<vmem>>
      %163 = tpu.memref_squeeze %162 : memref<1x1x128xf32, #tpu.memory_space<vmem>> -> memref<1x128xf32, #tpu.memory_space<vmem>>
      %164 = tpu.memref_slice %arg11[%128] : memref<2x!tpu.dma_semaphore, #tpu.memory_space<semaphore_mem>> -> memref<1x!tpu.dma_semaphore, #tpu.memory_space<semaphore_mem>>
      %165 = tpu.memref_squeeze %164 : memref<1x!tpu.dma_semaphore, #tpu.memory_space<semaphore_mem>> -> memref<!tpu.dma_semaphore, #tpu.memory_space<semaphore_mem>>
      tpu.enqueue_dma source(%161 : memref<1x128xf32, #tpu.memory_space<any>>) target(%163 : memref<1x128xf32, #tpu.memory_space<vmem>>) target_semaphore(%165 : memref<!tpu.dma_semaphore, #tpu.memory_space<semaphore_mem>>)
      %c4_i32_63 = arith.constant 4 : i32
      %166 = arith.addi %129, %c4_i32_63 : i32
      %167 = arith.index_cast %127 : i32 to index
      %168 = arith.index_cast %166 : i32 to index
      %169 = memref.load %arg2[%167, %168] : memref<2x32xi32, #tpu.memory_space<smem>>
      %c0_i32_64 = arith.constant 0 : i32
      %170 = tpu.memref_slice %arg3[%169, %c0_i32_64] : memref<64x128xf32, #tpu.memory_space<any>> -> memref<1x128xf32, #tpu.memory_space<any>>
      %c0_i32_65 = arith.constant 0 : i32
      %171 = tpu.memref_slice %arg10[%128, %c4_i32_63, %c0_i32_65] : memref<2x8x128xf32, #tpu.memory_space<vmem>> -> memref<1x1x128xf32, #tpu.memory_space<vmem>>
      %172 = tpu.memref_squeeze %171 : memref<1x1x128xf32, #tpu.memory_space<vmem>> -> memref<1x128xf32, #tpu.memory_space<vmem>>
      %173 = tpu.memref_slice %arg11[%128] : memref<2x!tpu.dma_semaphore, #tpu.memory_space<semaphore_mem>> -> memref<1x!tpu.dma_semaphore, #tpu.memory_space<semaphore_mem>>
      %174 = tpu.memref_squeeze %173 : memref<1x!tpu.dma_semaphore, #tpu.memory_space<semaphore_mem>> -> memref<!tpu.dma_semaphore, #tpu.memory_space<semaphore_mem>>
      tpu.enqueue_dma source(%170 : memref<1x128xf32, #tpu.memory_space<any>>) target(%172 : memref<1x128xf32, #tpu.memory_space<vmem>>) target_semaphore(%174 : memref<!tpu.dma_semaphore, #tpu.memory_space<semaphore_mem>>)
      %c5_i32_66 = arith.constant 5 : i32
      %175 = arith.addi %129, %c5_i32_66 : i32
      %176 = arith.index_cast %127 : i32 to index
      %177 = arith.index_cast %175 : i32 to index
      %178 = memref.load %arg2[%176, %177] : memref<2x32xi32, #tpu.memory_space<smem>>
      %c0_i32_67 = arith.constant 0 : i32
      %179 = tpu.memref_slice %arg3[%178, %c0_i32_67] : memref<64x128xf32, #tpu.memory_space<any>> -> memref<1x128xf32, #tpu.memory_space<any>>
      %c0_i32_68 = arith.constant 0 : i32
      %180 = tpu.memref_slice %arg10[%128, %c5_i32_66, %c0_i32_68] : memref<2x8x128xf32, #tpu.memory_space<vmem>> -> memref<1x1x128xf32, #tpu.memory_space<vmem>>
      %181 = tpu.memref_squeeze %180 : memref<1x1x128xf32, #tpu.memory_space<vmem>> -> memref<1x128xf32, #tpu.memory_space<vmem>>
      %182 = tpu.memref_slice %arg11[%128] : memref<2x!tpu.dma_semaphore, #tpu.memory_space<semaphore_mem>> -> memref<1x!tpu.dma_semaphore, #tpu.memory_space<semaphore_mem>>
      %183 = tpu.memref_squeeze %182 : memref<1x!tpu.dma_semaphore, #tpu.memory_space<semaphore_mem>> -> memref<!tpu.dma_semaphore, #tpu.memory_space<semaphore_mem>>
      tpu.enqueue_dma source(%179 : memref<1x128xf32, #tpu.memory_space<any>>) target(%181 : memref<1x128xf32, #tpu.memory_space<vmem>>) target_semaphore(%183 : memref<!tpu.dma_semaphore, #tpu.memory_space<semaphore_mem>>)
      %c6_i32_69 = arith.constant 6 : i32
      %184 = arith.addi %129, %c6_i32_69 : i32
      %185 = arith.index_cast %127 : i32 to index
      %186 = arith.index_cast %184 : i32 to index
      %187 = memref.load %arg2[%185, %186] : memref<2x32xi32, #tpu.memory_space<smem>>
      %c0_i32_70 = arith.constant 0 : i32
      %188 = tpu.memref_slice %arg3[%187, %c0_i32_70] : memref<64x128xf32, #tpu.memory_space<any>> -> memref<1x128xf32, #tpu.memory_space<any>>
      %c0_i32_71 = arith.constant 0 : i32
      %189 = tpu.memref_slice %arg10[%128, %c6_i32_69, %c0_i32_71] : memref<2x8x128xf32, #tpu.memory_space<vmem>> -> memref<1x1x128xf32, #tpu.memory_space<vmem>>
      %190 = tpu.memref_squeeze %189 : memref<1x1x128xf32, #tpu.memory_space<vmem>> -> memref<1x128xf32, #tpu.memory_space<vmem>>
      %191 = tpu.memref_slice %arg11[%128] : memref<2x!tpu.dma_semaphore, #tpu.memory_space<semaphore_mem>> -> memref<1x!tpu.dma_semaphore, #tpu.memory_space<semaphore_mem>>
      %192 = tpu.memref_squeeze %191 : memref<1x!tpu.dma_semaphore, #tpu.memory_space<semaphore_mem>> -> memref<!tpu.dma_semaphore, #tpu.memory_space<semaphore_mem>>
      tpu.enqueue_dma source(%188 : memref<1x128xf32, #tpu.memory_space<any>>) target(%190 : memref<1x128xf32, #tpu.memory_space<vmem>>) target_semaphore(%192 : memref<!tpu.dma_semaphore, #tpu.memory_space<semaphore_mem>>)
      %c7_i32_72 = arith.constant 7 : i32
      %193 = arith.addi %129, %c7_i32_72 : i32
      %194 = arith.index_cast %127 : i32 to index
      %195 = arith.index_cast %193 : i32 to index
      %196 = memref.load %arg2[%194, %195] : memref<2x32xi32, #tpu.memory_space<smem>>
      %c0_i32_73 = arith.constant 0 : i32
      %197 = tpu.memref_slice %arg3[%196, %c0_i32_73] : memref<64x128xf32, #tpu.memory_space<any>> -> memref<1x128xf32, #tpu.memory_space<any>>
      %c0_i32_74 = arith.constant 0 : i32
      %198 = tpu.memref_slice %arg10[%128, %c7_i32_72, %c0_i32_74] : memref<2x8x128xf32, #tpu.memory_space<vmem>> -> memref<1x1x128xf32, #tpu.memory_space<vmem>>
      %199 = tpu.memref_squeeze %198 : memref<1x1x128xf32, #tpu.memory_space<vmem>> -> memref<1x128xf32, #tpu.memory_space<vmem>>
      %200 = tpu.memref_slice %arg11[%128] : memref<2x!tpu.dma_semaphore, #tpu.memory_space<semaphore_mem>> -> memref<1x!tpu.dma_semaphore, #tpu.memory_space<semaphore_mem>>
      %201 = tpu.memref_squeeze %200 : memref<1x!tpu.dma_semaphore, #tpu.memory_space<semaphore_mem>> -> memref<!tpu.dma_semaphore, #tpu.memory_space<semaphore_mem>>
      tpu.enqueue_dma source(%197 : memref<1x128xf32, #tpu.memory_space<any>>) target(%199 : memref<1x128xf32, #tpu.memory_space<vmem>>) target_semaphore(%201 : memref<!tpu.dma_semaphore, #tpu.memory_space<semaphore_mem>>)
      %c8_i32_75 = arith.constant 8 : i32
    } else {
    }
    %c0 = arith.constant 0 : index
    %c0_3 = arith.constant 0 : index
    %c0_4 = arith.constant 0 : index
    %10 = vector.load %arg5[%c0, %c0_3, %c0_4] : memref<1x8x1xi32, #tpu.memory_space<vmem>>, vector<1x8x1xi32>
    %11 = vector.shape_cast %10 : vector<1x8x1xi32> to vector<8x1xi32>
    %12 = tpu.iota {dimensions = array<i32: 1>} : vector<8x2xi32>
    %13 = vector.broadcast %11 : vector<8x1xi32> to vector<8x2xi32>
    %14 = arith.cmpi eq, %13, %12 : vector<8x2xi32>
    %15 = arith.extui %14 : vector<8x2xi1> to vector<8x2xi32>
    %16 = arith.sitofp %15 : vector<8x2xi32> to vector<8x2xf32>
    %c0_5 = arith.constant 0 : index
    %c0_6 = arith.constant 0 : index
    %17 = vector.load %arg6[%c0_5, %c0_6] : memref<2x128xf32, #tpu.memory_space<vmem>>, vector<2x128xf32>
    %cst = arith.constant dense<0.000000e+00> : vector<8x128xf32>
    %18 = tpu.matmul %16, %17, %cst {dimension_numbers = #tpu.dot_dimension_numbers<[1], [0], [0], [1], [0, 0, 1, 1], [], []>} : vector<8x2xf32>, vector<2x128xf32>, vector<8x128xf32> -> vector<8x128xf32>
    %c0_7 = arith.constant 0 : index
    %c0_8 = arith.constant 0 : index
    %19 = vector.load %arg4[%c0_7, %c0_8] : memref<8x128xf32, #tpu.memory_space<vmem>>, vector<8x128xf32>
    %20 = arith.addf %19, %18 : vector<8x128xf32>
    %c8_i32_9 = arith.constant 8 : i32
    %21 = arith.muli %arg0, %c8_i32_9 : i32
    %c0_i32_10 = arith.constant 0 : i32
    %22 = arith.addi %21, %c0_i32_10 : i32
    %23 = arith.index_cast %arg1 : i32 to index
    %24 = arith.index_cast %22 : i32 to index
    %25 = memref.load %arg2[%23, %24] : memref<2x32xi32, #tpu.memory_space<smem>>
    %c0_i32_11 = arith.constant 0 : i32
    %26 = tpu.memref_slice %arg3[%25, %c0_i32_11] : memref<64x128xf32, #tpu.memory_space<any>> -> memref<1x128xf32, #tpu.memory_space<any>>
    %c0_i32_12 = arith.constant 0 : i32
    %27 = tpu.memref_slice %arg10[%2, %c0_i32_10, %c0_i32_12] : memref<2x8x128xf32, #tpu.memory_space<vmem>> -> memref<1x1x128xf32, #tpu.memory_space<vmem>>
    %28 = tpu.memref_squeeze %27 : memref<1x1x128xf32, #tpu.memory_space<vmem>> -> memref<1x128xf32, #tpu.memory_space<vmem>>
    %29 = tpu.memref_slice %arg11[%2] : memref<2x!tpu.dma_semaphore, #tpu.memory_space<semaphore_mem>> -> memref<1x!tpu.dma_semaphore, #tpu.memory_space<semaphore_mem>>
    %30 = tpu.memref_squeeze %29 : memref<1x!tpu.dma_semaphore, #tpu.memory_space<semaphore_mem>> -> memref<!tpu.dma_semaphore, #tpu.memory_space<semaphore_mem>>
    tpu.wait_dma2 semaphore(%30 : memref<!tpu.dma_semaphore, #tpu.memory_space<semaphore_mem>>) src(%26 : memref<1x128xf32, #tpu.memory_space<any>>) dst(%28 : memref<1x128xf32, #tpu.memory_space<vmem>>)
    %c1_i32_13 = arith.constant 1 : i32
    %31 = arith.addi %21, %c1_i32_13 : i32
    %32 = arith.index_cast %arg1 : i32 to index
    %33 = arith.index_cast %31 : i32 to index
    %34 = memref.load %arg2[%32, %33] : memref<2x32xi32, #tpu.memory_space<smem>>
    %c0_i32_14 = arith.constant 0 : i32
    %35 = tpu.memref_slice %arg3[%34, %c0_i32_14] : memref<64x128xf32, #tpu.memory_space<any>> -> memref<1x128xf32, #tpu.memory_space<any>>
    %c0_i32_15 = arith.constant 0 : i32
    %36 = tpu.memref_slice %arg10[%2, %c1_i32_13, %c0_i32_15] : memref<2x8x128xf32, #tpu.memory_space<vmem>> -> memref<1x1x128xf32, #tpu.memory_space<vmem>>
    %37 = tpu.memref_squeeze %36 : memref<1x1x128xf32, #tpu.memory_space<vmem>> -> memref<1x128xf32, #tpu.memory_space<vmem>>
    %38 = tpu.memref_slice %arg11[%2] : memref<2x!tpu.dma_semaphore, #tpu.memory_space<semaphore_mem>> -> memref<1x!tpu.dma_semaphore, #tpu.memory_space<semaphore_mem>>
    %39 = tpu.memref_squeeze %38 : memref<1x!tpu.dma_semaphore, #tpu.memory_space<semaphore_mem>> -> memref<!tpu.dma_semaphore, #tpu.memory_space<semaphore_mem>>
    tpu.wait_dma2 semaphore(%39 : memref<!tpu.dma_semaphore, #tpu.memory_space<semaphore_mem>>) src(%35 : memref<1x128xf32, #tpu.memory_space<any>>) dst(%37 : memref<1x128xf32, #tpu.memory_space<vmem>>)
    %c2_i32_16 = arith.constant 2 : i32
    %40 = arith.addi %21, %c2_i32_16 : i32
    %41 = arith.index_cast %arg1 : i32 to index
    %42 = arith.index_cast %40 : i32 to index
    %43 = memref.load %arg2[%41, %42] : memref<2x32xi32, #tpu.memory_space<smem>>
    %c0_i32_17 = arith.constant 0 : i32
    %44 = tpu.memref_slice %arg3[%43, %c0_i32_17] : memref<64x128xf32, #tpu.memory_space<any>> -> memref<1x128xf32, #tpu.memory_space<any>>
    %c0_i32_18 = arith.constant 0 : i32
    %45 = tpu.memref_slice %arg10[%2, %c2_i32_16, %c0_i32_18] : memref<2x8x128xf32, #tpu.memory_space<vmem>> -> memref<1x1x128xf32, #tpu.memory_space<vmem>>
    %46 = tpu.memref_squeeze %45 : memref<1x1x128xf32, #tpu.memory_space<vmem>> -> memref<1x128xf32, #tpu.memory_space<vmem>>
    %47 = tpu.memref_slice %arg11[%2] : memref<2x!tpu.dma_semaphore, #tpu.memory_space<semaphore_mem>> -> memref<1x!tpu.dma_semaphore, #tpu.memory_space<semaphore_mem>>
    %48 = tpu.memref_squeeze %47 : memref<1x!tpu.dma_semaphore, #tpu.memory_space<semaphore_mem>> -> memref<!tpu.dma_semaphore, #tpu.memory_space<semaphore_mem>>
    tpu.wait_dma2 semaphore(%48 : memref<!tpu.dma_semaphore, #tpu.memory_space<semaphore_mem>>) src(%44 : memref<1x128xf32, #tpu.memory_space<any>>) dst(%46 : memref<1x128xf32, #tpu.memory_space<vmem>>)
    %c3_i32 = arith.constant 3 : i32
    %49 = arith.addi %21, %c3_i32 : i32
    %50 = arith.index_cast %arg1 : i32 to index
    %51 = arith.index_cast %49 : i32 to index
    %52 = memref.load %arg2[%50, %51] : memref<2x32xi32, #tpu.memory_space<smem>>
    %c0_i32_19 = arith.constant 0 : i32
    %53 = tpu.memref_slice %arg3[%52, %c0_i32_19] : memref<64x128xf32, #tpu.memory_space<any>> -> memref<1x128xf32, #tpu.memory_space<any>>
    %c0_i32_20 = arith.constant 0 : i32
    %54 = tpu.memref_slice %arg10[%2, %c3_i32, %c0_i32_20] : memref<2x8x128xf32, #tpu.memory_space<vmem>> -> memref<1x1x128xf32, #tpu.memory_space<vmem>>
    %55 = tpu.memref_squeeze %54 : memref<1x1x128xf32, #tpu.memory_space<vmem>> -> memref<1x128xf32, #tpu.memory_space<vmem>>
    %56 = tpu.memref_slice %arg11[%2] : memref<2x!tpu.dma_semaphore, #tpu.memory_space<semaphore_mem>> -> memref<1x!tpu.dma_semaphore, #tpu.memory_space<semaphore_mem>>
    %57 = tpu.memref_squeeze %56 : memref<1x!tpu.dma_semaphore, #tpu.memory_space<semaphore_mem>> -> memref<!tpu.dma_semaphore, #tpu.memory_space<semaphore_mem>>
    tpu.wait_dma2 semaphore(%57 : memref<!tpu.dma_semaphore, #tpu.memory_space<semaphore_mem>>) src(%53 : memref<1x128xf32, #tpu.memory_space<any>>) dst(%55 : memref<1x128xf32, #tpu.memory_space<vmem>>)
    %c4_i32 = arith.constant 4 : i32
    %58 = arith.addi %21, %c4_i32 : i32
    %59 = arith.index_cast %arg1 : i32 to index
    %60 = arith.index_cast %58 : i32 to index
    %61 = memref.load %arg2[%59, %60] : memref<2x32xi32, #tpu.memory_space<smem>>
    %c0_i32_21 = arith.constant 0 : i32
    %62 = tpu.memref_slice %arg3[%61, %c0_i32_21] : memref<64x128xf32, #tpu.memory_space<any>> -> memref<1x128xf32, #tpu.memory_space<any>>
    %c0_i32_22 = arith.constant 0 : i32
    %63 = tpu.memref_slice %arg10[%2, %c4_i32, %c0_i32_22] : memref<2x8x128xf32, #tpu.memory_space<vmem>> -> memref<1x1x128xf32, #tpu.memory_space<vmem>>
    %64 = tpu.memref_squeeze %63 : memref<1x1x128xf32, #tpu.memory_space<vmem>> -> memref<1x128xf32, #tpu.memory_space<vmem>>
    %65 = tpu.memref_slice %arg11[%2] : memref<2x!tpu.dma_semaphore, #tpu.memory_space<semaphore_mem>> -> memref<1x!tpu.dma_semaphore, #tpu.memory_space<semaphore_mem>>
    %66 = tpu.memref_squeeze %65 : memref<1x!tpu.dma_semaphore, #tpu.memory_space<semaphore_mem>> -> memref<!tpu.dma_semaphore, #tpu.memory_space<semaphore_mem>>
    tpu.wait_dma2 semaphore(%66 : memref<!tpu.dma_semaphore, #tpu.memory_space<semaphore_mem>>) src(%62 : memref<1x128xf32, #tpu.memory_space<any>>) dst(%64 : memref<1x128xf32, #tpu.memory_space<vmem>>)
    %c5_i32 = arith.constant 5 : i32
    %67 = arith.addi %21, %c5_i32 : i32
    %68 = arith.index_cast %arg1 : i32 to index
    %69 = arith.index_cast %67 : i32 to index
    %70 = memref.load %arg2[%68, %69] : memref<2x32xi32, #tpu.memory_space<smem>>
    %c0_i32_23 = arith.constant 0 : i32
    %71 = tpu.memref_slice %arg3[%70, %c0_i32_23] : memref<64x128xf32, #tpu.memory_space<any>> -> memref<1x128xf32, #tpu.memory_space<any>>
    %c0_i32_24 = arith.constant 0 : i32
    %72 = tpu.memref_slice %arg10[%2, %c5_i32, %c0_i32_24] : memref<2x8x128xf32, #tpu.memory_space<vmem>> -> memref<1x1x128xf32, #tpu.memory_space<vmem>>
    %73 = tpu.memref_squeeze %72 : memref<1x1x128xf32, #tpu.memory_space<vmem>> -> memref<1x128xf32, #tpu.memory_space<vmem>>
    %74 = tpu.memref_slice %arg11[%2] : memref<2x!tpu.dma_semaphore, #tpu.memory_space<semaphore_mem>> -> memref<1x!tpu.dma_semaphore, #tpu.memory_space<semaphore_mem>>
    %75 = tpu.memref_squeeze %74 : memref<1x!tpu.dma_semaphore, #tpu.memory_space<semaphore_mem>> -> memref<!tpu.dma_semaphore, #tpu.memory_space<semaphore_mem>>
    tpu.wait_dma2 semaphore(%75 : memref<!tpu.dma_semaphore, #tpu.memory_space<semaphore_mem>>) src(%71 : memref<1x128xf32, #tpu.memory_space<any>>) dst(%73 : memref<1x128xf32, #tpu.memory_space<vmem>>)
    %c6_i32 = arith.constant 6 : i32
    %76 = arith.addi %21, %c6_i32 : i32
    %77 = arith.index_cast %arg1 : i32 to index
    %78 = arith.index_cast %76 : i32 to index
    %79 = memref.load %arg2[%77, %78] : memref<2x32xi32, #tpu.memory_space<smem>>
    %c0_i32_25 = arith.constant 0 : i32
    %80 = tpu.memref_slice %arg3[%79, %c0_i32_25] : memref<64x128xf32, #tpu.memory_space<any>> -> memref<1x128xf32, #tpu.memory_space<any>>
    %c0_i32_26 = arith.constant 0 : i32
    %81 = tpu.memref_slice %arg10[%2, %c6_i32, %c0_i32_26] : memref<2x8x128xf32, #tpu.memory_space<vmem>> -> memref<1x1x128xf32, #tpu.memory_space<vmem>>
    %82 = tpu.memref_squeeze %81 : memref<1x1x128xf32, #tpu.memory_space<vmem>> -> memref<1x128xf32, #tpu.memory_space<vmem>>
    %83 = tpu.memref_slice %arg11[%2] : memref<2x!tpu.dma_semaphore, #tpu.memory_space<semaphore_mem>> -> memref<1x!tpu.dma_semaphore, #tpu.memory_space<semaphore_mem>>
    %84 = tpu.memref_squeeze %83 : memref<1x!tpu.dma_semaphore, #tpu.memory_space<semaphore_mem>> -> memref<!tpu.dma_semaphore, #tpu.memory_space<semaphore_mem>>
    tpu.wait_dma2 semaphore(%84 : memref<!tpu.dma_semaphore, #tpu.memory_space<semaphore_mem>>) src(%80 : memref<1x128xf32, #tpu.memory_space<any>>) dst(%82 : memref<1x128xf32, #tpu.memory_space<vmem>>)
    %c7_i32 = arith.constant 7 : i32
    %85 = arith.addi %21, %c7_i32 : i32
    %86 = arith.index_cast %arg1 : i32 to index
    %87 = arith.index_cast %85 : i32 to index
    %88 = memref.load %arg2[%86, %87] : memref<2x32xi32, #tpu.memory_space<smem>>
    %c0_i32_27 = arith.constant 0 : i32
    %89 = tpu.memref_slice %arg3[%88, %c0_i32_27] : memref<64x128xf32, #tpu.memory_space<any>> -> memref<1x128xf32, #tpu.memory_space<any>>
    %c0_i32_28 = arith.constant 0 : i32
    %90 = tpu.memref_slice %arg10[%2, %c7_i32, %c0_i32_28] : memref<2x8x128xf32, #tpu.memory_space<vmem>> -> memref<1x1x128xf32, #tpu.memory_space<vmem>>
    %91 = tpu.memref_squeeze %90 : memref<1x1x128xf32, #tpu.memory_space<vmem>> -> memref<1x128xf32, #tpu.memory_space<vmem>>
    %92 = tpu.memref_slice %arg11[%2] : memref<2x!tpu.dma_semaphore, #tpu.memory_space<semaphore_mem>> -> memref<1x!tpu.dma_semaphore, #tpu.memory_space<semaphore_mem>>
    %93 = tpu.memref_squeeze %92 : memref<1x!tpu.dma_semaphore, #tpu.memory_space<semaphore_mem>> -> memref<!tpu.dma_semaphore, #tpu.memory_space<semaphore_mem>>
    tpu.wait_dma2 semaphore(%93 : memref<!tpu.dma_semaphore, #tpu.memory_space<semaphore_mem>>) src(%89 : memref<1x128xf32, #tpu.memory_space<any>>) dst(%91 : memref<1x128xf32, #tpu.memory_space<vmem>>)
    %c8_i32_29 = arith.constant 8 : i32
    %94 = arith.index_cast %2 : i32 to index
    %c0_30 = arith.constant 0 : index
    %c0_31 = arith.constant 0 : index
    %95 = vector.load %arg10[%94, %c0_30, %c0_31] : memref<2x8x128xf32, #tpu.memory_space<vmem>>, vector<1x8x128xf32>
    %96 = vector.shape_cast %95 : vector<1x8x128xf32> to vector<8x128xf32>
    %97 = arith.addf %20, %96 : vector<8x128xf32>
    %cst_32 = arith.constant dense<0.000000e+00> : vector<8xf32>
    %98 = vector.multi_reduction <add>, %97, %cst_32 [1] : vector<8x128xf32> to vector<8xf32>
    %99 = vector.shape_cast %98 : vector<8xf32> to vector<8x1xf32>
    %cst_33 = arith.constant 1.280000e+02 : f32
    %100 = vector.broadcast %cst_33 : f32 to vector<8x1xf32>
    %101 = arith.divf %99, %100 : vector<8x1xf32>
    %102 = vector.broadcast %101 : vector<8x1xf32> to vector<8x128xf32>
    %103 = arith.subf %97, %102 : vector<8x128xf32>
    %104 = arith.mulf %103, %103 : vector<8x128xf32>
    %cst_34 = arith.constant dense<0.000000e+00> : vector<8xf32>
    %105 = vector.multi_reduction <add>, %104, %cst_34 [1] : vector<8x128xf32> to vector<8xf32>
    %106 = vector.shape_cast %105 : vector<8xf32> to vector<8x1xf32>
    %cst_35 = arith.constant 1.280000e+02 : f32
    %107 = vector.broadcast %cst_35 : f32 to vector<8x1xf32>
    %108 = arith.divf %106, %107 : vector<8x1xf32>
    %cst_36 = arith.constant 9.99999974E-6 : f32
    %109 = vector.broadcast %cst_36 : f32 to vector<8x1xf32>
    %110 = arith.addf %108, %109 : vector<8x1xf32>
    %111 = math.rsqrt %110 : vector<8x1xf32>
    %112 = vector.broadcast %111 : vector<8x1xf32> to vector<8x128xf32>
    %113 = arith.mulf %103, %112 : vector<8x128xf32>
    %c0_37 = arith.constant 0 : index
    %c0_38 = arith.constant 0 : index
    %114 = vector.load %arg7[%c0_37, %c0_38] : memref<1x128xf32, #tpu.memory_space<vmem>>, vector<1x128xf32>
    %115 = vector.broadcast %114 : vector<1x128xf32> to vector<8x128xf32>
    %116 = arith.mulf %113, %115 : vector<8x128xf32>
    %c0_39 = arith.constant 0 : index
    %c0_40 = arith.constant 0 : index
    %117 = vector.load %arg8[%c0_39, %c0_40] : memref<1x128xf32, #tpu.memory_space<vmem>>, vector<1x128xf32>
    %118 = vector.broadcast %117 : vector<1x128xf32> to vector<8x128xf32>
    %119 = arith.addf %116, %118 : vector<8x128xf32>
    %c0_41 = arith.constant 0 : index
    %c0_42 = arith.constant 0 : index
    %c0_43 = arith.constant 0 : index
    %120 = vector.load %arg9[%c0_41, %c0_42, %c0_43] : memref<1x8x128xf32, #tpu.memory_space<vmem>>, vector<1x8x128xf32>
    %121 = vector.shape_cast %120 : vector<1x8x128xf32> to vector<8x128xf32>
    %122 = vector.shape_cast %119 : vector<8x128xf32> to vector<1x8x128xf32>
    tpu.vector_store %arg9[%c0_41, %c0_42, %c0_43], %122 {strides = array<i32>} : memref<1x8x128xf32, #tpu.memory_space<vmem>>, vector<1x8x128xf32>,
    return
  }
  func.func @transform_1(%arg0: i32, %arg1: i32, %arg2: memref<2x32xi32, #tpu.memory_space<smem>>) -> (i32, i32) {
    %c0_i32 = arith.constant 0 : i32
    %c0_i32_0 = arith.constant 0 : i32
    return %arg0, %c0_i32 : i32, i32
  }
  func.func @transform_2(%arg0: i32, %arg1: i32, %arg2: memref<2x32xi32, #tpu.memory_space<smem>>) -> (i32, i32, i32) {
    %c0_i32 = arith.constant 0 : i32
    %c0_i32_0 = arith.constant 0 : i32
    return %arg1, %arg0, %c0_i32 : i32, i32, i32
  }
  func.func @transform_3(%arg0: i32, %arg1: i32, %arg2: memref<2x32xi32, #tpu.memory_space<smem>>) -> (i32, i32) {
    %c0_i32 = arith.constant 0 : i32
    %c0_i32_0 = arith.constant 0 : i32
    %c0_i32_1 = arith.constant 0 : i32
    return %c0_i32, %c0_i32_0 : i32, i32
  }
  func.func @transform_4(%arg0: i32, %arg1: i32, %arg2: memref<2x32xi32, #tpu.memory_space<smem>>) -> (i32, i32) {
    %c0_i32 = arith.constant 0 : i32
    %c0_i32_0 = arith.constant 0 : i32
    %c0_i32_1 = arith.constant 0 : i32
    return %c0_i32, %c0_i32_0 : i32, i32
  }
  func.func @transform_5(%arg0: i32, %arg1: i32, %arg2: memref<2x32xi32, #tpu.memory_space<smem>>) -> (i32, i32) {
    %c0_i32 = arith.constant 0 : i32
    %c0_i32_0 = arith.constant 0 : i32
    %c0_i32_1 = arith.constant 0 : i32
    return %c0_i32, %c0_i32_0 : i32, i32
  }
  func.func @transform_6(%arg0: i32, %arg1: i32, %arg2: memref<2x32xi32, #tpu.memory_space<smem>>) -> (i32, i32, i32) {
    %c0_i32 = arith.constant 0 : i32
    %c0_i32_0 = arith.constant 0 : i32
    return %arg1, %arg0, %c0_i32 : i32, i32, i32
  }
}

</mosaic_0001>

<llo_original>
// kernel: tpu_custom_call.1
$region0: #{tpu_custom_call.1}
  #allocation0 [shape = 'u32[]', space=smem, size = 0x4, offset = 0x4, fixed_abs, tag = 'smem constant byte address 0x4 - core index']
  #allocation1 [shape = 'u32[72,128]{1,0:T(1,128)}', space=vmem, size = 0x9000, scoped, tag = 'internal scratch']
  #allocation2 [shape = 'f32[2,8,128]{2,1,0:T(8,128)}', space=vmem, size = 0x2000, scoped, tag = 'scratch operand']
  #allocation3 [shape = 's32[2]{0}', space=sflag, size = 0x8, scoped, tag = 'scratch operand']
  #allocation4 [shape = 's32[1]{0}', space=sflag, size = 0x4, scoped, tag = 'scoped memory for tpu_custom_call.1']
  #allocation5 [shape = 'u8[1024]{0}', space=smem, size = 0x400, scoped, tag = 'prefetched SMEM operand 0']
  #allocation12 [shape = 's32[]', space=sflag, size = 0x4, offset = 0, fixed_abs, tag = 'sflag constant byte address 0x0 - dummy sync flag']
  #allocation13 [shape = 's32[]', space=sflag, size = 0x4, offset = 0, fixed_abs, tag = 'sflag constant byte address 0x0 - dummy sync flag']
  #allocation14 [shape = 's32[]', space=sflag, size = 0x4, offset = 0, fixed_abs, tag = 'sflag constant byte address 0x0 - dummy sync flag']
  #allocation15 [shape = 's32[]', space=sflag, size = 0x4, offset = 0, fixed_abs, tag = 'sflag constant byte address 0x0 - dummy sync flag']
  #allocation16 [shape = 's32[]', space=sflag, size = 0x4, offset = 0, fixed_abs, tag = 'sflag constant byte address 0x0 - dummy sync flag']
  #allocation17 [shape = 's32[]', space=sflag, size = 0x4, offset = 0, fixed_abs, tag = 'sflag constant byte address 0x0 - dummy sync flag']
  #allocation18 [shape = 's32[]', space=sflag, size = 0x4, offset = 0, fixed_abs, tag = 'sflag constant byte address 0x0 - dummy sync flag']
  #allocation19 [shape = 's32[]', space=sflag, size = 0x4, offset = 0, fixed_abs, tag = 'sflag constant byte address 0x0 - dummy sync flag']
  #allocation20 [shape = 's32[]', space=sflag, size = 0x4, offset = 0, fixed_abs, tag = 'sflag constant byte address 0x0 - dummy sync flag']
  #allocation21 [shape = 's32[]', space=sflag, size = 0x4, offset = 0, fixed_abs, tag = 'sflag constant byte address 0x0 - dummy sync flag']
  #allocation22 [shape = 's32[]', space=sflag, size = 0x4, offset = 0, fixed_abs, tag = 'sflag constant byte address 0x0 - dummy sync flag']
  #allocation23 [shape = 's32[]', space=sflag, size = 0x4, offset = 0, fixed_abs, tag = 'sflag constant byte address 0x0 - dummy sync flag']
  #allocation24 [shape = 's32[]', space=sflag, size = 0x4, offset = 0, fixed_abs, tag = 'sflag constant byte address 0x0 - dummy sync flag']
  #allocation25 [shape = 's32[]', space=sflag, size = 0x4, offset = 0, fixed_abs, tag = 'sflag constant byte address 0x0 - dummy sync flag']
  #allocation26 [shape = 's32[]', space=sflag, size = 0x4, offset = 0, fixed_abs, tag = 'sflag constant byte address 0x0 - dummy sync flag']
  #allocation27 [shape = 's32[]', space=sflag, size = 0x4, offset = 0, fixed_abs, tag = 'sflag constant byte address 0x0 - dummy sync flag']
  %s0 = inlined_call_operand.vmem [shape: s32[2,32], index: 0, kind: input, shape index: {}]
  %s1 = inlined_call_operand.vmem [shape: f32[64,128], index: 1, kind: input, shape index: {}]
  %s2 = inlined_call_operand.hbm [shape: f32[64,128], index: 2, kind: input, shape index: {}]
  %s3 = inlined_call_operand.vmem [shape: s32[2,32,1], index: 3, kind: input, shape index: {}]
  %s4 = inlined_call_operand.hbm [shape: f32[2,128], index: 4, kind: input, shape index: {}]
  %s5 = inlined_call_operand.vmem [shape: f32[1,128], index: 5, kind: input, shape index: {}]
  %s6 = inlined_call_operand.vmem [shape: f32[1,128], index: 6, kind: input, shape index: {}]
  %s7 = inlined_call_operand.hbm [shape: f32[2,32,128], index: 7, kind: output, shape index: {}]
  %s8 = sld [smem:[#allocation0]]
  $region549: #{tpu_custom_call.1} parent=0
    _
  %s10 = ssub.s32 1, %s8
  %s11 = scalar_select 0, %s10, %s8
  %s13 = sshll.u32 %s0, 4
  %s14 = int_to_ptr.vmem [resolvable:$true] %s13
  %16 = dma.vmem_to_smem %s14, 32, [#allocation5], [#allocation4]
  %18 = dma.done [#allocation4], 32
  %19 = sfence
  $region1: #{tpu_custom_call.1} parent=0
    #allocation6 [shape = 'u8[8192]{0}', space=vmem, size = 0x2000, scoped, tag = 'input window, operand 2']
    #allocation7 [shape = 's32[2]{0}', space=sflag, size = 0x8, scoped, tag = 'scoped memory for tpu_custom_call.1']
    #allocation8 [shape = 's32[2]{0}', space=sflag, size = 0x8, scoped, tag = 'scoped memory for tpu_custom_call.1']
    #allocation9 [shape = 'u8[1024]{0}', space=vmem, size = 0x400, scoped, tag = 'input window, operand 4, single buffered']
    #allocation10 [shape = 's32[1]{0}', space=sflag, size = 0x4, scoped, tag = 'scoped memory for tpu_custom_call.1']
    #allocation11 [shape = 'u8[8192]{0}', space=vmem, size = 0x2000, scoped, tag = 'output window, operand 0']
    %20 = vsyncpa [#allocation7], 0
    %s21 = scalar_lea.sflag [#allocation7], 1
    %22 = vsyncpa %s21, 0
    %23 = vsyncpa [#allocation10], 0
    %24 = vsyncpa [#allocation8], 0
    %s25 = scalar_lea.sflag [#allocation8], 1
    %26 = vsyncpa %s25, 0
    loop: start=0, step=1, limit=10
    $region2: #{tpu_custom_call.1} parent=1 // loop_pre_header
      _
    $region3: #{tpu_custom_call.1} parent=1 // loop_header
      %s28 = sphi 0, %s32
      %p29 = scmp.ge.s32.totalorder %s28, 10
      %s35 = sphi 0, %s47
      %s36 = sphi 0, %s43
      %s37 = sphi 0, %s35
      %s38 = sphi 0, %s36
      %s39 = sphi 0, %s37
      %s40 = sphi 0, %s38
      %s50 = sphi 0, %s52
      %s53 = sphi 0, %s50
      %s54 = sphi 0, %s53
      %s70 = sphi 0, %s54
      %s78 = sphi 0, %s80
      %s81 = sphi 0, %s78
      %s82 = sphi 0, %s81
      %s98 = sphi 0, %s82
      %s102 = sphi 0, %s102
      %s104 = sphi 0, %s102
      %s105 = sphi 0, %s104
      %s119 = sphi 0, %s105
      %s123 = sphi 0, %s123
      %s125 = sphi 0, %s123
      %s126 = sphi 0, %s125
      %s140 = sphi 0, %s126
      %s144 = sphi 0, %s144
      %s146 = sphi 0, %s144
      %s147 = sphi 0, %s146
      %s161 = sphi 0, %s147
      %s169 = sphi 0, %s171
      %s172 = sphi 0, %s169
      %s173 = sphi 0, %s172
      %s189 = sphi 0, %s173
    $region4: #{tpu_custom_call.1} parent=1 // loop_header_branch
      %31 = sbr.rel (%p29) target = $region8
    $region5: #{tpu_custom_call.1} parent=1 // loop_body
      %s33 = ssub.s32 %s28, 1
      %s34 = ssub.s32 %s28, 2
      %s41 = sadd.s32 1, %s36
      %p42 = scmp.ge.s32.totalorder %s41, 2
      %s43 = scalar_select %p42, 0, %s41
      %s44 = sadd.s32 1, %s35
      %s45 = scalar_select %p42, %s44, %s35
      %p46 = scmp.ge.s32.totalorder %s45, 4
      %s47 = scalar_select %p46, 0, %s45
      %s48 = ssub.s32 %s35, %s47
      %p49 = scmp.eq.s32.totalorder %s48, 0
      %s51 = sadd.s32 %s50, 1
      %s52 = scalar_select %p49, %s50, %s51
      %p55 = pneg %p49
      %p56 = scmp.eq.s32.totalorder %s28, 7
      %p57 = por %p55, %p56
      %p58 = scmp.ne.s32.totalorder %s50, %s53
      %p59 = scmp.eq.s32.totalorder %s28, 0
      %p60 = por %p58, %p59
      %p61 = scmp.ne.s32.totalorder %s50, %s53
      %p62 = scmp.eq.s32.totalorder %s33, 7
      %p63 = por %p61, %p62
      %p64 = scmp.ne.s32.totalorder %s53, %s54
      %p65 = scmp.eq.s32.totalorder %s33, 0
      %p66 = por %p64, %p65
      %p67 = scmp.ne.s32.totalorder %s53, %s54
      %p68 = scmp.eq.s32.totalorder %s34, 7
      %p69 = por %p67, %p68
      %p71 = scmp.ne.s32.totalorder %s54, %s70
      %p72 = scmp.eq.s32.totalorder %s34, 0
      %p73 = por %p71, %p72
      %s74 = ssub.s32 %s36, %s43
      %s75 = ssub.s32 %s35, %s47
      %s76 = sor.u32 %s74, %s75
      %p77 = scmp.eq.s32.totalorder %s76, 0
      %s79 = sadd.s32 %s78, 1
      %s80 = scalar_select %p77, %s78, %s79
      %p83 = pneg %p77
      %p84 = scmp.eq.s32.totalorder %s28, 7
      %p85 = por %p83, %p84
      %p86 = scmp.ne.s32.totalorder %s78, %s81
      %p87 = scmp.eq.s32.totalorder %s28, 0
      %p88 = por %p86, %p87
      %p89 = scmp.ne.s32.totalorder %s78, %s81
      %p90 = scmp.eq.s32.totalorder %s33, 7
      %p91 = por %p89, %p90
      %p92 = scmp.ne.s32.totalorder %s81, %s82
      %p93 = scmp.eq.s32.totalorder %s33, 0
      %p94 = por %p92, %p93
      %p95 = scmp.ne.s32.totalorder %s81, %s82
      %p96 = scmp.eq.s32.totalorder %s34, 7
      %p97 = por %p95, %p96
      %p99 = scmp.ne.s32.totalorder %s82, %s98
      %p100 = scmp.eq.s32.totalorder %s34, 0
      %p101 = por %p99, %p100
      %s103 = sadd.s32 %s102, 1
      %p106 = scmp.eq.s32.totalorder %s28, 7
      %p107 = scmp.ne.s32.totalorder %s102, %s104
      %p108 = scmp.eq.s32.totalorder %s28, 0
      %p109 = por %p107, %p108
      %p110 = scmp.ne.s32.totalorder %s102, %s104
      %p111 = scmp.eq.s32.totalorder %s33, 7
      %p112 = por %p110, %p111
      %p113 = scmp.ne.s32.totalorder %s104, %s105
      %p114 = scmp.eq.s32.totalorder %s33, 0
      %p115 = por %p113, %p114
      %p116 = scmp.ne.s32.totalorder %s104, %s105
      %p117 = scmp.eq.s32.totalorder %s34, 7
      %p118 = por %p116, %p117
      %p120 = scmp.ne.s32.totalorder %s105, %s119
      %p121 = scmp.eq.s32.totalorder %s34, 0
      %p122 = por %p120, %p121
      %s124 = sadd.s32 %s123, 1
      %p127 = scmp.eq.s32.totalorder %s28, 7
      %p128 = scmp.ne.s32.totalorder %s123, %s125
      %p129 = scmp.eq.s32.totalorder %s28, 0
      %p130 = por %p128, %p129
      %p131 = scmp.ne.s32.totalorder %s123, %s125
      %p132 = scmp.eq.s32.totalorder %s33, 7
      %p133 = por %p131, %p132
      %p134 = scmp.ne.s32.totalorder %s125, %s126
      %p135 = scmp.eq.s32.totalorder %s33, 0
      %p136 = por %p134, %p135
      %p137 = scmp.ne.s32.totalorder %s125, %s126
      %p138 = scmp.eq.s32.totalorder %s34, 7
      %p139 = por %p137, %p138
      %p141 = scmp.ne.s32.totalorder %s126, %s140
      %p142 = scmp.eq.s32.totalorder %s34, 0
      %p143 = por %p141, %p142
      %s145 = sadd.s32 %s144, 1
      %p148 = scmp.eq.s32.totalorder %s28, 7
      %p149 = scmp.ne.s32.totalorder %s144, %s146
      %p150 = scmp.eq.s32.totalorder %s28, 0
      %p151 = por %p149, %p150
      %p152 = scmp.ne.s32.totalorder %s144, %s146
      %p153 = scmp.eq.s32.totalorder %s33, 7
      %p154 = por %p152, %p153
      %p155 = scmp.ne.s32.totalorder %s146, %s147
      %p156 = scmp.eq.s32.totalorder %s33, 0
      %p157 = por %p155, %p156
      %p158 = scmp.ne.s32.totalorder %s146, %s147
      %p159 = scmp.eq.s32.totalorder %s34, 7
      %p160 = por %p158, %p159
      %p162 = scmp.ne.s32.totalorder %s147, %s161
      %p163 = scmp.eq.s32.totalorder %s34, 0
      %p164 = por %p162, %p163
      %s165 = ssub.s32 %s36, %s43
      %s166 = ssub.s32 %s35, %s47
      %s167 = sor.u32 %s165, %s166
      %p168 = scmp.eq.s32.totalorder %s167, 0
      %s170 = sadd.s32 %s169, 1
      %s171 = scalar_select %p168, %s169, %s170
      %p174 = pneg %p168
      %p175 = scmp.eq.s32.totalorder %s28, 7
      %p176 = por %p174, %p175
      %p177 = scmp.ne.s32.totalorder %s169, %s172
      %p178 = scmp.eq.s32.totalorder %s28, 0
      %p179 = por %p177, %p178
      %p180 = scmp.ne.s32.totalorder %s169, %s172
      %p181 = scmp.eq.s32.totalorder %s33, 7
      %p182 = por %p180, %p181
      %p183 = scmp.ne.s32.totalorder %s172, %s173
      %p184 = scmp.eq.s32.totalorder %s33, 0
      %p185 = por %p183, %p184
      %p186 = scmp.ne.s32.totalorder %s172, %s173
      %p187 = scmp.eq.s32.totalorder %s34, 7
      %p188 = por %p186, %p187
      %p190 = scmp.ne.s32.totalorder %s173, %s189
      %p191 = scmp.eq.s32.totalorder %s34, 0
      %p192 = por %p190, %p191
      %p193 = scmp.le.s32.totalorder 1, %s28
      %p194 = scmp.lt.s32.totalorder %s28, 9
      %p195 = pnand %p193, %p194
      %p196 = pneg %p195
      // Predicated region
      $region9: #{tpu_custom_call.1} parent=5 // pred_check
        _
      $region10: #{tpu_custom_call.1} parent=5 // pred_check_branch
        %198 = sbr.rel (%p195) target = $region12
      $region11: #{tpu_custom_call.1} parent=5 // pred_region
        %s199 = ssub.s32 %s28, 1
        // Predicated region
        $region13: #{tpu_custom_call.1} parent=11 // pred_check
          %p200 = pneg %p115
        $region14: #{tpu_custom_call.1} parent=11 // pred_check_branch
          %202 = sbr.rel (%p200) target = $region16
        $region15: #{tpu_custom_call.1} parent=11 // pred_region
          %204 = vsyncadd [#allocation10], 0
          %s206 = sshll.u32 %s4, 4
          %s207 = int_to_ptr.hbm [resolvable:$true] %s206
          %s208 = sshll.u32 [#allocation9], 4
          %s209 = int_to_ptr.vmem [resolvable:$true] %s208
          %211 = dma.hbm_to_vmem [thread:$0]  %s207, 32, %s209, [#allocation10]
        $region16: #{tpu_custom_call.1} parent=11 // pred_fallthru
          _
        // Predicated region
        $region17: #{tpu_custom_call.1} parent=11 // pred_check
          %p212 = pneg %p136
        $region18: #{tpu_custom_call.1} parent=11 // pred_check_branch
          %214 = sbr.rel (%p212) target = $region20
        $region19: #{tpu_custom_call.1} parent=11 // pred_region
          _
        $region20: #{tpu_custom_call.1} parent=11 // pred_fallthru
          _
        // Predicated region
        $region21: #{tpu_custom_call.1} parent=11 // pred_check
          %p215 = pneg %p157
        $region22: #{tpu_custom_call.1} parent=11 // pred_check_branch
          %217 = sbr.rel (%p215) target = $region24
        $region23: #{tpu_custom_call.1} parent=11 // pred_region
          _
        $region24: #{tpu_custom_call.1} parent=11 // pred_fallthru
          _
      $region12: #{tpu_custom_call.1} parent=5 // pred_fallthru
        _
      %p218 = scmp.lt.s32.totalorder %s28, 8
      // Predicated region
      $region25: #{tpu_custom_call.1} parent=5 // pred_check
        %p219 = pneg %p218
      $region26: #{tpu_custom_call.1} parent=5 // pred_check_branch
        %221 = sbr.rel (%p219) target = $region28
      $region27: #{tpu_custom_call.1} parent=5 // pred_region
        // Predicated region
        $region29: #{tpu_custom_call.1} parent=27 // pred_check
          %p222 = pneg %p60
        $region30: #{tpu_custom_call.1} parent=27 // pred_check_branch
          %224 = sbr.rel (%p222) target = $region32
        $region31: #{tpu_custom_call.1} parent=27 // pred_region
          %s225 = sand.u32 %s50, 1
          %s226 = scalar_lea.sflag [#allocation7], %s225
          %s227 = sand.u32 %s50, 1
          %s228 = smul.addr %s227, 8
          %s229 = scalar_lea.vmem [#allocation6], %s228
          %231 = vsyncadd %s226, 0
          %s232 = smul.addr %s35, 8
          %s233 = scalar_lea.hbm %s2, %s232
          %s235 = sshll.u32 %s233, 4
          %s236 = int_to_ptr.hbm [resolvable:$true] %s235
          %s237 = sshll.u32 %s229, 4
          %s238 = int_to_ptr.vmem [resolvable:$true] %s237
          %240 = dma.hbm_to_vmem [thread:$0]  %s236, 128, %s238, %s226
        $region32: #{tpu_custom_call.1} parent=27 // pred_fallthru
          _
        // Predicated region
        $region33: #{tpu_custom_call.1} parent=27 // pred_check
          %p241 = pneg %p88
        $region34: #{tpu_custom_call.1} parent=27 // pred_check_branch
          %243 = sbr.rel (%p241) target = $region36
        $region35: #{tpu_custom_call.1} parent=27 // pred_region
          %p244 = scmp.lt.s32.totalorder %s36, 1
          %s245 = scalar_select %p244, %s36, 1
          %p246 = scmp.lt.s32.totalorder %s35, 3
          %s247 = scalar_select %p246, %s35, 3
          %s248 = smul.addr %s245, 4
          %s249 = sadd.s32 %s247, %s248
          %s250 = smul.addr %s249, 8
          %s251 = scalar_lea.vmem %s3, %s250
        $region36: #{tpu_custom_call.1} parent=27 // pred_fallthru
          _
      $region28: #{tpu_custom_call.1} parent=5 // pred_fallthru
        _
      %p252 = scmp.le.s32.totalorder 1, %s28
      %p253 = scmp.lt.s32.totalorder %s28, 9
      %p254 = pnand %p252, %p253
      %p255 = pneg %p254
      // Predicated region
      $region37: #{tpu_custom_call.1} parent=5 // pred_check
        _
      $region38: #{tpu_custom_call.1} parent=5 // pred_check_branch
        %257 = sbr.rel (%p254) target = $region40
      $region39: #{tpu_custom_call.1} parent=5 // pred_region
        %s258 = ssub.s32 %s28, 1
        %s259 = sand.u32 %s53, 1
        %s260 = scalar_lea.sflag [#allocation7], %s259
        %s261 = sand.u32 %s53, 1
        %s262 = smul.addr %s261, 8
        %s263 = scalar_lea.vmem [#allocation6], %s262
        // Predicated region
        $region41: #{tpu_custom_call.1} parent=39 // pred_check
          %p264 = pneg %p66
        $region42: #{tpu_custom_call.1} parent=39 // pred_check_branch
          %266 = sbr.rel (%p264) target = $region44
        $region43: #{tpu_custom_call.1} parent=39 // pred_region
          %268 = dma.done %s260, 128
        $region44: #{tpu_custom_call.1} parent=39 // pred_fallthru
          _
        // Predicated region
        $region45: #{tpu_custom_call.1} parent=39 // pred_check
          %p269 = pneg %p115
        $region46: #{tpu_custom_call.1} parent=39 // pred_check_branch
          %271 = sbr.rel (%p269) target = $region48
        $region47: #{tpu_custom_call.1} parent=39 // pred_region
          %273 = dma.done [#allocation10], 32
        $region48: #{tpu_custom_call.1} parent=39 // pred_fallthru
          _
        %s274 = sand.u32 %s53, 1
        %s275 = scalar_lea.sflag [#allocation7], %s274
        %s276 = sand.u32 %s53, 1
        %s277 = smul.addr %s276, 8
        %s278 = scalar_lea.vmem [#allocation6], %s277
        %p279 = pneg %p66
        %p280 = pneg %p63
        %p281 = scmp.lt.s32.totalorder %s38, 1
        %s282 = scalar_select %p281, %s38, 1
        %p283 = scmp.lt.s32.totalorder %s37, 3
        %s284 = scalar_select %p283, %s37, 3
        %s285 = smul.addr %s282, 4
        %s286 = sadd.s32 %s284, %s285
        %s287 = smul.addr %s286, 8
        %s288 = scalar_lea.vmem %s3, %s287
        %p289 = pneg %p94
        %p290 = pneg %p91
        %p291 = pneg %p115
        %p292 = pneg %p112
        %p293 = pneg %p136
        %p294 = pneg %p133
        %p295 = pneg %p157
        %p296 = pneg %p154
        %p297 = pneg %p185
        %p298 = pneg %p182
        %s299 = sand.u32 %s172, 1
        %s300 = scalar_lea.sflag [#allocation8], %s299
        %s301 = sand.u32 %s172, 1
        %s302 = smul.addr %s301, 8
        %s303 = scalar_lea.vmem [#allocation11], %s302
        %p304 = scmp.lt.s32.totalorder %s38, 1
        %s305 = scalar_select %p304, %s38, 1
        %p306 = scmp.lt.s32.totalorder %s37, 3
        %s307 = scalar_select %p306, %s37, 3
        %s308 = smul.addr %s305, 4
        %s309 = sadd.s32 %s307, %s308
        %s310 = smul.addr %s309, 8
        %s311 = scalar_lea.vmem %s3, %s310
        %s312 = smul.u32 %s37, 2
        %s313 = sadd.s32 %s312, %s38
        %p314 = scmp.lt.s32.totalorder %s313, 0
        %s315 = ssub.s32 0, %s313
        %s316 = scalar_select %p314, %s315, %s313
        %s317 = sand.u32 %s316, 1
        %s318 = ssub.s32 0, %s317
        %s319 = scalar_select %p314, %s318, %s317
        %p320 = scmp.eq.s32.totalorder %s313, 0
        // Predicated region
        $region49: #{tpu_custom_call.1} parent=39 // pred_check
          %p321 = pneg %p320
        $region50: #{tpu_custom_call.1} parent=39 // pred_check_branch
          %323 = sbr.rel (%p321) target = $region52
        $region51: #{tpu_custom_call.1} parent=39 // pred_region
          %s324 = smul.u32 %s37, 8
          %s325 = sshra.s32 %s324, 7
          %s326 = sand.u32 %s324, 127
          %s327 = sadd.s32 %s325, %s38
          %s328 = smul.u32 %s327, 128
          %s329 = sshra.s32 %s324, 7
          %s330 = sand.u32 %s324, 127
          %s331 = sadd.s32 %s328, %s330
          %s332 = sld [smem:[#allocation5 + %s331]]
          %s333 = scalar_lea.vmem %s1, %s332
          %s334 = smul.u32 %s319, 8
          %s335 = scalar_lea.vmem [#allocation2], %s334
          %s336 = scalar_lea.sflag [#allocation3], %s319
          // Predicated region
          $region53: #{tpu_custom_call.1} parent=51 // pred_check
            _
          $region54: #{tpu_custom_call.1} parent=51 // pred_check_branch
            %338 = sbr.rel target = $region56
          $region55: #{tpu_custom_call.1} parent=51 // pred_region
            // Predicated region
            $region68: #{tpu_custom_call.1} parent=55 // pred_check
              _
            $region69: #{tpu_custom_call.1} parent=55 // pred_check_branch
              %354 = sbr.rel (0) target = $region71
            $region70: #{tpu_custom_call.1} parent=55 // pred_region
              %s356 = ssub.s32 2, 1
              loop: start=0, step=1, limit=1
              $region72: #{tpu_custom_call.1} parent=70 // loop_pre_header
                _
              $region73: #{tpu_custom_call.1} parent=70 // loop_header
                %s358 = sphi 0, %s362
                %p359 = scmp.ge.s32.totalorder %s358, 1
                %s363 = sphi %s333, %s333
                %s364 = sphi %s335, %s335
              $region74: #{tpu_custom_call.1} parent=70 // loop_header_branch
                %361 = sbr.rel (%p359) target = $region78
              $region75: #{tpu_custom_call.1} parent=70 // loop_body
                %v365 = vld [vmem:[%s363] sm:%s356]
                %366 = vst [vmem:[%s364] sm:%s356] %v365
              $region76: #{tpu_custom_call.1} parent=70 // loop_footer
                %s362 = sadd.s32 1, %s358
              $region77: #{tpu_custom_call.1} parent=70 // loop_footer_branch
                %357 = sbr.rel target = $region73
              $region78: #{tpu_custom_call.1} parent=70 // loop_exit
                _
            $region71: #{tpu_custom_call.1} parent=55 // pred_fallthru
              _
          $region56: #{tpu_custom_call.1} parent=51 // pred_fallthru
            _
          // Predicated region
          $region57: #{tpu_custom_call.1} parent=51 // pred_check
            _
          $region58: #{tpu_custom_call.1} parent=51 // pred_check_branch
            %340 = sbr.rel (0) target = $region60
          $region59: #{tpu_custom_call.1} parent=51 // pred_region
            %s342 = ssub.s32 2, 1
            loop: start=0, step=1, limit=1
            $region61: #{tpu_custom_call.1} parent=59 // loop_pre_header
              _
            $region62: #{tpu_custom_call.1} parent=59 // loop_header
              %s344 = sphi 0, %s348
              %p345 = scmp.ge.s32.totalorder %s344, 1
              %s349 = sphi %s333, %s333
              %s350 = sphi %s335, %s335
            $region63: #{tpu_custom_call.1} parent=59 // loop_header_branch
              %347 = sbr.rel (%p345) target = $region67
            $region64: #{tpu_custom_call.1} parent=59 // loop_body
              %v351 = vld [vmem:[%s349] sm:%s342]
              %352 = vst [vmem:[%s350] sm:%s342] %v351
            $region65: #{tpu_custom_call.1} parent=59 // loop_footer
              %s348 = sadd.s32 1, %s344
            $region66: #{tpu_custom_call.1} parent=59 // loop_footer_branch
              %343 = sbr.rel target = $region62
            $region67: #{tpu_custom_call.1} parent=59 // loop_exit
              _
          $region60: #{tpu_custom_call.1} parent=51 // pred_fallthru
            _
          // Predicated region
          $region79: #{tpu_custom_call.1} parent=51 // pred_check
            _
          $region80: #{tpu_custom_call.1} parent=51 // pred_check_branch
            %369 = sbr.rel (0) target = $region82
          $region81: #{tpu_custom_call.1} parent=51 // pred_region
            %370 = vsyncadd %s336, 16
          $region82: #{tpu_custom_call.1} parent=51 // pred_fallthru
            _
          %s371 = sadd.s32 %s324, 1
          %s372 = sshra.s32 %s371, 7
          %s373 = sand.u32 %s371, 127
          %s374 = sadd.s32 %s372, %s38
          %s375 = smul.u32 %s374, 128
          %s376 = sshra.s32 %s371, 7
          %s377 = sand.u32 %s371, 127
          %s378 = sadd.s32 %s375, %s377
          %s379 = sld [smem:[#allocation5 + %s378]]
          %s380 = scalar_lea.vmem %s1, %s379
          %s381 = sadd.s32 1, %s334
          %s382 = scalar_lea.vmem [#allocation2], %s381
          // Predicated region
          $region83: #{tpu_custom_call.1} parent=51 // pred_check
            _
          $region84: #{tpu_custom_call.1} parent=51 // pred_check_branch
            %384 = sbr.rel target = $region86
          $region85: #{tpu_custom_call.1} parent=51 // pred_region
            // Predicated region
            $region98: #{tpu_custom_call.1} parent=85 // pred_check
              _
            $region99: #{tpu_custom_call.1} parent=85 // pred_check_branch
              %400 = sbr.rel (0) target = $region101
            $region100: #{tpu_custom_call.1} parent=85 // pred_region
              %s402 = ssub.s32 2, 1
              loop: start=0, step=1, limit=1
              $region102: #{tpu_custom_call.1} parent=100 // loop_pre_header
                _
              $region103: #{tpu_custom_call.1} parent=100 // loop_header
                %s404 = sphi 0, %s408
                %p405 = scmp.ge.s32.totalorder %s404, 1
                %s409 = sphi %s380, %s380
                %s410 = sphi %s382, %s382
              $region104: #{tpu_custom_call.1} parent=100 // loop_header_branch
                %407 = sbr.rel (%p405) target = $region108
              $region105: #{tpu_custom_call.1} parent=100 // loop_body
                %v411 = vld [vmem:[%s409] sm:%s402]
                %412 = vst [vmem:[%s410] sm:%s402] %v411
              $region106: #{tpu_custom_call.1} parent=100 // loop_footer
                %s408 = sadd.s32 1, %s404
              $region107: #{tpu_custom_call.1} parent=100 // loop_footer_branch
                %403 = sbr.rel target = $region103
              $region108: #{tpu_custom_call.1} parent=100 // loop_exit
                _
            $region101: #{tpu_custom_call.1} parent=85 // pred_fallthru
              _
          $region86: #{tpu_custom_call.1} parent=51 // pred_fallthru
            _
          // Predicated region
          $region87: #{tpu_custom_call.1} parent=51 // pred_check
            _
          $region88: #{tpu_custom_call.1} parent=51 // pred_check_branch
            %386 = sbr.rel (0) target = $region90
          $region89: #{tpu_custom_call.1} parent=51 // pred_region
            %s388 = ssub.s32 2, 1
            loop: start=0, step=1, limit=1
            $region91: #{tpu_custom_call.1} parent=89 // loop_pre_header
              _
            $region92: #{tpu_custom_call.1} parent=89 // loop_header
              %s390 = sphi 0, %s394
              %p391 = scmp.ge.s32.totalorder %s390, 1
              %s395 = sphi %s380, %s380
              %s396 = sphi %s382, %s382
            $region93: #{tpu_custom_call.1} parent=89 // loop_header_branch
              %393 = sbr.rel (%p391) target = $region97
            $region94: #{tpu_custom_call.1} parent=89 // loop_body
              %v397 = vld [vmem:[%s395] sm:%s388]
              %398 = vst [vmem:[%s396] sm:%s388] %v397
            $region95: #{tpu_custom_call.1} parent=89 // loop_footer
              %s394 = sadd.s32 1, %s390
            $region96: #{tpu_custom_call.1} parent=89 // loop_footer_branch
              %389 = sbr.rel target = $region92
            $region97: #{tpu_custom_call.1} parent=89 // loop_exit
              _
          $region90: #{tpu_custom_call.1} parent=51 // pred_fallthru
            _
          // Predicated region
          $region109: #{tpu_custom_call.1} parent=51 // pred_check
            _
          $region110: #{tpu_custom_call.1} parent=51 // pred_check_branch
            %415 = sbr.rel (0) target = $region112
          $region111: #{tpu_custom_call.1} parent=51 // pred_region
            %416 = vsyncadd %s336, 16
          $region112: #{tpu_custom_call.1} parent=51 // pred_fallthru
            _
          %s417 = sadd.s32 %s324, 2
          %s418 = sshra.s32 %s417, 7
          %s419 = sand.u32 %s417, 127
          %s420 = sadd.s32 %s418, %s38
          %s421 = smul.u32 %s420, 128
          %s422 = sshra.s32 %s417, 7
          %s423 = sand.u32 %s417, 127
          %s424 = sadd.s32 %s421, %s423
          %s425 = sld [smem:[#allocation5 + %s424]]
          %s426 = scalar_lea.vmem %s1, %s425
          %s427 = sadd.s32 2, %s334
          %s428 = scalar_lea.vmem [#allocation2], %s427
          // Predicated region
          $region113: #{tpu_custom_call.1} parent=51 // pred_check
            _
          $region114: #{tpu_custom_call.1} parent=51 // pred_check_branch
            %430 = sbr.rel target = $region116
          $region115: #{tpu_custom_call.1} parent=51 // pred_region
            // Predicated region
            $region128: #{tpu_custom_call.1} parent=115 // pred_check
              _
            $region129: #{tpu_custom_call.1} parent=115 // pred_check_branch
              %446 = sbr.rel (0) target = $region131
            $region130: #{tpu_custom_call.1} parent=115 // pred_region
              %s448 = ssub.s32 2, 1
              loop: start=0, step=1, limit=1
              $region132: #{tpu_custom_call.1} parent=130 // loop_pre_header
                _
              $region133: #{tpu_custom_call.1} parent=130 // loop_header
                %s450 = sphi 0, %s454
                %p451 = scmp.ge.s32.totalorder %s450, 1
                %s455 = sphi %s426, %s426
                %s456 = sphi %s428, %s428
              $region134: #{tpu_custom_call.1} parent=130 // loop_header_branch
                %453 = sbr.rel (%p451) target = $region138
              $region135: #{tpu_custom_call.1} parent=130 // loop_body
                %v457 = vld [vmem:[%s455] sm:%s448]
                %458 = vst [vmem:[%s456] sm:%s448] %v457
              $region136: #{tpu_custom_call.1} parent=130 // loop_footer
                %s454 = sadd.s32 1, %s450
              $region137: #{tpu_custom_call.1} parent=130 // loop_footer_branch
                %449 = sbr.rel target = $region133
              $region138: #{tpu_custom_call.1} parent=130 // loop_exit
                _
            $region131: #{tpu_custom_call.1} parent=115 // pred_fallthru
              _
          $region116: #{tpu_custom_call.1} parent=51 // pred_fallthru
            _
          // Predicated region
          $region117: #{tpu_custom_call.1} parent=51 // pred_check
            _
          $region118: #{tpu_custom_call.1} parent=51 // pred_check_branch
            %432 = sbr.rel (0) target = $region120
          $region119: #{tpu_custom_call.1} parent=51 // pred_region
            %s434 = ssub.s32 2, 1
            loop: start=0, step=1, limit=1
            $region121: #{tpu_custom_call.1} parent=119 // loop_pre_header
              _
            $region122: #{tpu_custom_call.1} parent=119 // loop_header
              %s436 = sphi 0, %s440
              %p437 = scmp.ge.s32.totalorder %s436, 1
              %s441 = sphi %s426, %s426
              %s442 = sphi %s428, %s428
            $region123: #{tpu_custom_call.1} parent=119 // loop_header_branch
              %439 = sbr.rel (%p437) target = $region127
            $region124: #{tpu_custom_call.1} parent=119 // loop_body
              %v443 = vld [vmem:[%s441] sm:%s434]
              %444 = vst [vmem:[%s442] sm:%s434] %v443
            $region125: #{tpu_custom_call.1} parent=119 // loop_footer
              %s440 = sadd.s32 1, %s436
            $region126: #{tpu_custom_call.1} parent=119 // loop_footer_branch
              %435 = sbr.rel target = $region122
            $region127: #{tpu_custom_call.1} parent=119 // loop_exit
              _
          $region120: #{tpu_custom_call.1} parent=51 // pred_fallthru
            _
          // Predicated region
          $region139: #{tpu_custom_call.1} parent=51 // pred_check
            _
          $region140: #{tpu_custom_call.1} parent=51 // pred_check_branch
            %461 = sbr.rel (0) target = $region142
          $region141: #{tpu_custom_call.1} parent=51 // pred_region
            %462 = vsyncadd %s336, 16
          $region142: #{tpu_custom_call.1} parent=51 // pred_fallthru
            _
          %s463 = sadd.s32 %s324, 3
          %s464 = sshra.s32 %s463, 7
          %s465 = sand.u32 %s463, 127
          %s466 = sadd.s32 %s464, %s38
          %s467 = smul.u32 %s466, 128
          %s468 = sshra.s32 %s463, 7
          %s469 = sand.u32 %s463, 127
          %s470 = sadd.s32 %s467, %s469
          %s471 = sld [smem:[#allocation5 + %s470]]
          %s472 = scalar_lea.vmem %s1, %s471
          %s473 = sadd.s32 3, %s334
          %s474 = scalar_lea.vmem [#allocation2], %s473
          // Predicated region
          $region143: #{tpu_custom_call.1} parent=51 // pred_check
            _
          $region144: #{tpu_custom_call.1} parent=51 // pred_check_branch
            %476 = sbr.rel target = $region146
          $region145: #{tpu_custom_call.1} parent=51 // pred_region
            // Predicated region
            $region158: #{tpu_custom_call.1} parent=145 // pred_check
              _
            $region159: #{tpu_custom_call.1} parent=145 // pred_check_branch
              %492 = sbr.rel (0) target = $region161
            $region160: #{tpu_custom_call.1} parent=145 // pred_region
              %s494 = ssub.s32 2, 1
              loop: start=0, step=1, limit=1
              $region162: #{tpu_custom_call.1} parent=160 // loop_pre_header
                _
              $region163: #{tpu_custom_call.1} parent=160 // loop_header
                %s496 = sphi 0, %s500
                %p497 = scmp.ge.s32.totalorder %s496, 1
                %s501 = sphi %s472, %s472
                %s502 = sphi %s474, %s474
              $region164: #{tpu_custom_call.1} parent=160 // loop_header_branch
                %499 = sbr.rel (%p497) target = $region168
              $region165: #{tpu_custom_call.1} parent=160 // loop_body
                %v503 = vld [vmem:[%s501] sm:%s494]
                %504 = vst [vmem:[%s502] sm:%s494] %v503
              $region166: #{tpu_custom_call.1} parent=160 // loop_footer
                %s500 = sadd.s32 1, %s496
              $region167: #{tpu_custom_call.1} parent=160 // loop_footer_branch
                %495 = sbr.rel target = $region163
              $region168: #{tpu_custom_call.1} parent=160 // loop_exit
                _
            $region161: #{tpu_custom_call.1} parent=145 // pred_fallthru
              _
          $region146: #{tpu_custom_call.1} parent=51 // pred_fallthru
            _
          // Predicated region
          $region147: #{tpu_custom_call.1} parent=51 // pred_check
            _
          $region148: #{tpu_custom_call.1} parent=51 // pred_check_branch
            %478 = sbr.rel (0) target = $region150
          $region149: #{tpu_custom_call.1} parent=51 // pred_region
            %s480 = ssub.s32 2, 1
            loop: start=0, step=1, limit=1
            $region151: #{tpu_custom_call.1} parent=149 // loop_pre_header
              _
            $region152: #{tpu_custom_call.1} parent=149 // loop_header
              %s482 = sphi 0, %s486
              %p483 = scmp.ge.s32.totalorder %s482, 1
              %s487 = sphi %s472, %s472
              %s488 = sphi %s474, %s474
            $region153: #{tpu_custom_call.1} parent=149 // loop_header_branch
              %485 = sbr.rel (%p483) target = $region157
            $region154: #{tpu_custom_call.1} parent=149 // loop_body
              %v489 = vld [vmem:[%s487] sm:%s480]
              %490 = vst [vmem:[%s488] sm:%s480] %v489
            $region155: #{tpu_custom_call.1} parent=149 // loop_footer
              %s486 = sadd.s32 1, %s482
            $region156: #{tpu_custom_call.1} parent=149 // loop_footer_branch
              %481 = sbr.rel target = $region152
            $region157: #{tpu_custom_call.1} parent=149 // loop_exit
              _
          $region150: #{tpu_custom_call.1} parent=51 // pred_fallthru
            _
          // Predicated region
          $region169: #{tpu_custom_call.1} parent=51 // pred_check
            _
          $region170: #{tpu_custom_call.1} parent=51 // pred_check_branch
            %507 = sbr.rel (0) target = $region172
          $region171: #{tpu_custom_call.1} parent=51 // pred_region
            %508 = vsyncadd %s336, 16
          $region172: #{tpu_custom_call.1} parent=51 // pred_fallthru
            _
          %s509 = sadd.s32 %s324, 4
          %s510 = sshra.s32 %s509, 7
          %s511 = sand.u32 %s509, 127
          %s512 = sadd.s32 %s510, %s38
          %s513 = smul.u32 %s512, 128
          %s514 = sshra.s32 %s509, 7
          %s515 = sand.u32 %s509, 127
          %s516 = sadd.s32 %s513, %s515
          %s517 = sld [smem:[#allocation5 + %s516]]
          %s518 = scalar_lea.vmem %s1, %s517
          %s519 = sadd.s32 4, %s334
          %s520 = scalar_lea.vmem [#allocation2], %s519
          // Predicated region
          $region173: #{tpu_custom_call.1} parent=51 // pred_check
            _
          $region174: #{tpu_custom_call.1} parent=51 // pred_check_branch
            %522 = sbr.rel target = $region176
          $region175: #{tpu_custom_call.1} parent=51 // pred_region
            // Predicated region
            $region188: #{tpu_custom_call.1} parent=175 // pred_check
              _
            $region189: #{tpu_custom_call.1} parent=175 // pred_check_branch
              %538 = sbr.rel (0) target = $region191
            $region190: #{tpu_custom_call.1} parent=175 // pred_region
              %s540 = ssub.s32 2, 1
              loop: start=0, step=1, limit=1
              $region192: #{tpu_custom_call.1} parent=190 // loop_pre_header
                _
              $region193: #{tpu_custom_call.1} parent=190 // loop_header
                %s542 = sphi 0, %s546
                %p543 = scmp.ge.s32.totalorder %s542, 1
                %s547 = sphi %s518, %s518
                %s548 = sphi %s520, %s520
              $region194: #{tpu_custom_call.1} parent=190 // loop_header_branch
                %545 = sbr.rel (%p543) target = $region198
              $region195: #{tpu_custom_call.1} parent=190 // loop_body
                %v549 = vld [vmem:[%s547] sm:%s540]
                %550 = vst [vmem:[%s548] sm:%s540] %v549
              $region196: #{tpu_custom_call.1} parent=190 // loop_footer
                %s546 = sadd.s32 1, %s542
              $region197: #{tpu_custom_call.1} parent=190 // loop_footer_branch
                %541 = sbr.rel target = $region193
              $region198: #{tpu_custom_call.1} parent=190 // loop_exit
                _
            $region191: #{tpu_custom_call.1} parent=175 // pred_fallthru
              _
          $region176: #{tpu_custom_call.1} parent=51 // pred_fallthru
            _
          // Predicated region
          $region177: #{tpu_custom_call.1} parent=51 // pred_check
            _
          $region178: #{tpu_custom_call.1} parent=51 // pred_check_branch
            %524 = sbr.rel (0) target = $region180
          $region179: #{tpu_custom_call.1} parent=51 // pred_region
            %s526 = ssub.s32 2, 1
            loop: start=0, step=1, limit=1
            $region181: #{tpu_custom_call.1} parent=179 // loop_pre_header
              _
            $region182: #{tpu_custom_call.1} parent=179 // loop_header
              %s528 = sphi 0, %s532
              %p529 = scmp.ge.s32.totalorder %s528, 1
              %s533 = sphi %s518, %s518
              %s534 = sphi %s520, %s520
            $region183: #{tpu_custom_call.1} parent=179 // loop_header_branch
              %531 = sbr.rel (%p529) target = $region187
            $region184: #{tpu_custom_call.1} parent=179 // loop_body
              %v535 = vld [vmem:[%s533] sm:%s526]
              %536 = vst [vmem:[%s534] sm:%s526] %v535
            $region185: #{tpu_custom_call.1} parent=179 // loop_footer
              %s532 = sadd.s32 1, %s528
            $region186: #{tpu_custom_call.1} parent=179 // loop_footer_branch
              %527 = sbr.rel target = $region182
            $region187: #{tpu_custom_call.1} parent=179 // loop_exit
              _
          $region180: #{tpu_custom_call.1} parent=51 // pred_fallthru
            _
          // Predicated region
          $region199: #{tpu_custom_call.1} parent=51 // pred_check
            _
          $region200: #{tpu_custom_call.1} parent=51 // pred_check_branch
            %553 = sbr.rel (0) target = $region202
          $region201: #{tpu_custom_call.1} parent=51 // pred_region
            %554 = vsyncadd %s336, 16
          $region202: #{tpu_custom_call.1} parent=51 // pred_fallthru
            _
          %s555 = sadd.s32 %s324, 5
          %s556 = sshra.s32 %s555, 7
          %s557 = sand.u32 %s555, 127
          %s558 = sadd.s32 %s556, %s38
          %s559 = smul.u32 %s558, 128
          %s560 = sshra.s32 %s555, 7
          %s561 = sand.u32 %s555, 127
          %s562 = sadd.s32 %s559, %s561
          %s563 = sld [smem:[#allocation5 + %s562]]
          %s564 = scalar_lea.vmem %s1, %s563
          %s565 = sadd.s32 5, %s334
          %s566 = scalar_lea.vmem [#allocation2], %s565
          // Predicated region
          $region203: #{tpu_custom_call.1} parent=51 // pred_check
            _
          $region204: #{tpu_custom_call.1} parent=51 // pred_check_branch
            %568 = sbr.rel target = $region206
          $region205: #{tpu_custom_call.1} parent=51 // pred_region
            // Predicated region
            $region218: #{tpu_custom_call.1} parent=205 // pred_check
              _
            $region219: #{tpu_custom_call.1} parent=205 // pred_check_branch
              %584 = sbr.rel (0) target = $region221
            $region220: #{tpu_custom_call.1} parent=205 // pred_region
              %s586 = ssub.s32 2, 1
              loop: start=0, step=1, limit=1
              $region222: #{tpu_custom_call.1} parent=220 // loop_pre_header
                _
              $region223: #{tpu_custom_call.1} parent=220 // loop_header
                %s588 = sphi 0, %s592
                %p589 = scmp.ge.s32.totalorder %s588, 1
                %s593 = sphi %s564, %s564
                %s594 = sphi %s566, %s566
              $region224: #{tpu_custom_call.1} parent=220 // loop_header_branch
                %591 = sbr.rel (%p589) target = $region228
              $region225: #{tpu_custom_call.1} parent=220 // loop_body
                %v595 = vld [vmem:[%s593] sm:%s586]
                %596 = vst [vmem:[%s594] sm:%s586] %v595
              $region226: #{tpu_custom_call.1} parent=220 // loop_footer
                %s592 = sadd.s32 1, %s588
              $region227: #{tpu_custom_call.1} parent=220 // loop_footer_branch
                %587 = sbr.rel target = $region223
              $region228: #{tpu_custom_call.1} parent=220 // loop_exit
                _
            $region221: #{tpu_custom_call.1} parent=205 // pred_fallthru
              _
          $region206: #{tpu_custom_call.1} parent=51 // pred_fallthru
            _
          // Predicated region
          $region207: #{tpu_custom_call.1} parent=51 // pred_check
            _
          $region208: #{tpu_custom_call.1} parent=51 // pred_check_branch
            %570 = sbr.rel (0) target = $region210
          $region209: #{tpu_custom_call.1} parent=51 // pred_region
            %s572 = ssub.s32 2, 1
            loop: start=0, step=1, limit=1
            $region211: #{tpu_custom_call.1} parent=209 // loop_pre_header
              _
            $region212: #{tpu_custom_call.1} parent=209 // loop_header
              %s574 = sphi 0, %s578
              %p575 = scmp.ge.s32.totalorder %s574, 1
              %s579 = sphi %s564, %s564
              %s580 = sphi %s566, %s566
            $region213: #{tpu_custom_call.1} parent=209 // loop_header_branch
              %577 = sbr.rel (%p575) target = $region217
            $region214: #{tpu_custom_call.1} parent=209 // loop_body
              %v581 = vld [vmem:[%s579] sm:%s572]
              %582 = vst [vmem:[%s580] sm:%s572] %v581
            $region215: #{tpu_custom_call.1} parent=209 // loop_footer
              %s578 = sadd.s32 1, %s574
            $region216: #{tpu_custom_call.1} parent=209 // loop_footer_branch
              %573 = sbr.rel target = $region212
            $region217: #{tpu_custom_call.1} parent=209 // loop_exit
              _
          $region210: #{tpu_custom_call.1} parent=51 // pred_fallthru
            _
          // Predicated region
          $region229: #{tpu_custom_call.1} parent=51 // pred_check
            _
          $region230: #{tpu_custom_call.1} parent=51 // pred_check_branch
            %599 = sbr.rel (0) target = $region232
          $region231: #{tpu_custom_call.1} parent=51 // pred_region
            %600 = vsyncadd %s336, 16
          $region232: #{tpu_custom_call.1} parent=51 // pred_fallthru
            _
          %s601 = sadd.s32 %s324, 6
          %s602 = sshra.s32 %s601, 7
          %s603 = sand.u32 %s601, 127
          %s604 = sadd.s32 %s602, %s38
          %s605 = smul.u32 %s604, 128
          %s606 = sshra.s32 %s601, 7
          %s607 = sand.u32 %s601, 127
          %s608 = sadd.s32 %s605, %s607
          %s609 = sld [smem:[#allocation5 + %s608]]
          %s610 = scalar_lea.vmem %s1, %s609
          %s611 = sadd.s32 6, %s334
          %s612 = scalar_lea.vmem [#allocation2], %s611
          // Predicated region
          $region233: #{tpu_custom_call.1} parent=51 // pred_check
            _
          $region234: #{tpu_custom_call.1} parent=51 // pred_check_branch
            %614 = sbr.rel target = $region236
          $region235: #{tpu_custom_call.1} parent=51 // pred_region
            // Predicated region
            $region248: #{tpu_custom_call.1} parent=235 // pred_check
              _
            $region249: #{tpu_custom_call.1} parent=235 // pred_check_branch
              %630 = sbr.rel (0) target = $region251
            $region250: #{tpu_custom_call.1} parent=235 // pred_region
              %s632 = ssub.s32 2, 1
              loop: start=0, step=1, limit=1
              $region252: #{tpu_custom_call.1} parent=250 // loop_pre_header
                _
              $region253: #{tpu_custom_call.1} parent=250 // loop_header
                %s634 = sphi 0, %s638
                %p635 = scmp.ge.s32.totalorder %s634, 1
                %s639 = sphi %s610, %s610
                %s640 = sphi %s612, %s612
              $region254: #{tpu_custom_call.1} parent=250 // loop_header_branch
                %637 = sbr.rel (%p635) target = $region258
              $region255: #{tpu_custom_call.1} parent=250 // loop_body
                %v641 = vld [vmem:[%s639] sm:%s632]
                %642 = vst [vmem:[%s640] sm:%s632] %v641
              $region256: #{tpu_custom_call.1} parent=250 // loop_footer
                %s638 = sadd.s32 1, %s634
              $region257: #{tpu_custom_call.1} parent=250 // loop_footer_branch
                %633 = sbr.rel target = $region253
              $region258: #{tpu_custom_call.1} parent=250 // loop_exit
                _
            $region251: #{tpu_custom_call.1} parent=235 // pred_fallthru
              _
          $region236: #{tpu_custom_call.1} parent=51 // pred_fallthru
            _
          // Predicated region
          $region237: #{tpu_custom_call.1} parent=51 // pred_check
            _
          $region238: #{tpu_custom_call.1} parent=51 // pred_check_branch
            %616 = sbr.rel (0) target = $region240
          $region239: #{tpu_custom_call.1} parent=51 // pred_region
            %s618 = ssub.s32 2, 1
            loop: start=0, step=1, limit=1
            $region241: #{tpu_custom_call.1} parent=239 // loop_pre_header
              _
            $region242: #{tpu_custom_call.1} parent=239 // loop_header
              %s620 = sphi 0, %s624
              %p621 = scmp.ge.s32.totalorder %s620, 1
              %s625 = sphi %s610, %s610
              %s626 = sphi %s612, %s612
            $region243: #{tpu_custom_call.1} parent=239 // loop_header_branch
              %623 = sbr.rel (%p621) target = $region247
            $region244: #{tpu_custom_call.1} parent=239 // loop_body
              %v627 = vld [vmem:[%s625] sm:%s618]
              %628 = vst [vmem:[%s626] sm:%s618] %v627
            $region245: #{tpu_custom_call.1} parent=239 // loop_footer
              %s624 = sadd.s32 1, %s620
            $region246: #{tpu_custom_call.1} parent=239 // loop_footer_branch
              %619 = sbr.rel target = $region242
            $region247: #{tpu_custom_call.1} parent=239 // loop_exit
              _
          $region240: #{tpu_custom_call.1} parent=51 // pred_fallthru
            _
          // Predicated region
          $region259: #{tpu_custom_call.1} parent=51 // pred_check
            _
          $region260: #{tpu_custom_call.1} parent=51 // pred_check_branch
            %645 = sbr.rel (0) target = $region262
          $region261: #{tpu_custom_call.1} parent=51 // pred_region
            %646 = vsyncadd %s336, 16
          $region262: #{tpu_custom_call.1} parent=51 // pred_fallthru
            _
          %s647 = sadd.s32 %s324, 7
          %s648 = sshra.s32 %s647, 7
          %s649 = sand.u32 %s647, 127
          %s650 = sadd.s32 %s648, %s38
          %s651 = smul.u32 %s650, 128
          %s652 = sshra.s32 %s647, 7
          %s653 = sand.u32 %s647, 127
          %s654 = sadd.s32 %s651, %s653
          %s655 = sld [smem:[#allocation5 + %s654]]
          %s656 = scalar_lea.vmem %s1, %s655
          %s657 = sadd.s32 7, %s334
          %s658 = scalar_lea.vmem [#allocation2], %s657
          // Predicated region
          $region263: #{tpu_custom_call.1} parent=51 // pred_check
            _
          $region264: #{tpu_custom_call.1} parent=51 // pred_check_branch
            %660 = sbr.rel target = $region266
          $region265: #{tpu_custom_call.1} parent=51 // pred_region
            // Predicated region
            $region278: #{tpu_custom_call.1} parent=265 // pred_check
              _
            $region279: #{tpu_custom_call.1} parent=265 // pred_check_branch
              %676 = sbr.rel (0) target = $region281
            $region280: #{tpu_custom_call.1} parent=265 // pred_region
              %s678 = ssub.s32 2, 1
              loop: start=0, step=1, limit=1
              $region282: #{tpu_custom_call.1} parent=280 // loop_pre_header
                _
              $region283: #{tpu_custom_call.1} parent=280 // loop_header
                %s680 = sphi 0, %s684
                %p681 = scmp.ge.s32.totalorder %s680, 1
                %s685 = sphi %s656, %s656
                %s686 = sphi %s658, %s658
              $region284: #{tpu_custom_call.1} parent=280 // loop_header_branch
                %683 = sbr.rel (%p681) target = $region288
              $region285: #{tpu_custom_call.1} parent=280 // loop_body
                %v687 = vld [vmem:[%s685] sm:%s678]
                %688 = vst [vmem:[%s686] sm:%s678] %v687
              $region286: #{tpu_custom_call.1} parent=280 // loop_footer
                %s684 = sadd.s32 1, %s680
              $region287: #{tpu_custom_call.1} parent=280 // loop_footer_branch
                %679 = sbr.rel target = $region283
              $region288: #{tpu_custom_call.1} parent=280 // loop_exit
                _
            $region281: #{tpu_custom_call.1} parent=265 // pred_fallthru
              _
          $region266: #{tpu_custom_call.1} parent=51 // pred_fallthru
            _
          // Predicated region
          $region267: #{tpu_custom_call.1} parent=51 // pred_check
            _
          $region268: #{tpu_custom_call.1} parent=51 // pred_check_branch
            %662 = sbr.rel (0) target = $region270
          $region269: #{tpu_custom_call.1} parent=51 // pred_region
            %s664 = ssub.s32 2, 1
            loop: start=0, step=1, limit=1
            $region271: #{tpu_custom_call.1} parent=269 // loop_pre_header
              _
            $region272: #{tpu_custom_call.1} parent=269 // loop_header
              %s666 = sphi 0, %s670
              %p667 = scmp.ge.s32.totalorder %s666, 1
              %s671 = sphi %s656, %s656
              %s672 = sphi %s658, %s658
            $region273: #{tpu_custom_call.1} parent=269 // loop_header_branch
              %669 = sbr.rel (%p667) target = $region277
            $region274: #{tpu_custom_call.1} parent=269 // loop_body
              %v673 = vld [vmem:[%s671] sm:%s664]
              %674 = vst [vmem:[%s672] sm:%s664] %v673
            $region275: #{tpu_custom_call.1} parent=269 // loop_footer
              %s670 = sadd.s32 1, %s666
            $region276: #{tpu_custom_call.1} parent=269 // loop_footer_branch
              %665 = sbr.rel target = $region272
            $region277: #{tpu_custom_call.1} parent=269 // loop_exit
              _
          $region270: #{tpu_custom_call.1} parent=51 // pred_fallthru
            _
          // Predicated region
          $region289: #{tpu_custom_call.1} parent=51 // pred_check
            _
          $region290: #{tpu_custom_call.1} parent=51 // pred_check_branch
            %691 = sbr.rel (0) target = $region292
          $region291: #{tpu_custom_call.1} parent=51 // pred_region
            %692 = vsyncadd %s336, 16
          $region292: #{tpu_custom_call.1} parent=51 // pred_fallthru
            _
        $region52: #{tpu_custom_call.1} parent=39 // pred_fallthru
          _
        %s693 = sadd.s32 %s313, 1
        %p694 = scmp.lt.s32.totalorder %s693, 8
        // Predicated region
        $region293: #{tpu_custom_call.1} parent=39 // pred_check
          %p695 = pneg %p694
        $region294: #{tpu_custom_call.1} parent=39 // pred_check_branch
          %697 = sbr.rel (%p695) target = $region296
        $region295: #{tpu_custom_call.1} parent=39 // pred_region
          %s698 = sadd.s32 %s38, 1
          %p699 = scmp.eq.s32.totalorder %s698, 2
          %s700 = scalar_select %p699, 1, 0
          %s701 = sadd.s32 %s37, %s700
          %s702 = scalar_select %p699, 0, %s698
          %s703 = ssub.s32 1, %s319
          %s704 = smul.u32 %s701, 8
          %s705 = sshra.s32 %s704, 7
          %s706 = sand.u32 %s704, 127
          %s707 = sadd.s32 %s705, %s702
          %s708 = smul.u32 %s707, 128
          %s709 = sshra.s32 %s704, 7
          %s710 = sand.u32 %s704, 127
          %s711 = sadd.s32 %s708, %s710
          %s712 = sld [smem:[#allocation5 + %s711]]
          %s713 = scalar_lea.vmem %s1, %s712
          %s714 = smul.u32 %s703, 8
          %s715 = scalar_lea.vmem [#allocation2], %s714
          %s716 = scalar_lea.sflag [#allocation3], %s703
          // Predicated region
          $region297: #{tpu_custom_call.1} parent=295 // pred_check
            _
          $region298: #{tpu_custom_call.1} parent=295 // pred_check_branch
            %718 = sbr.rel target = $region300
          $region299: #{tpu_custom_call.1} parent=295 // pred_region
            // Predicated region
            $region312: #{tpu_custom_call.1} parent=299 // pred_check
              _
            $region313: #{tpu_custom_call.1} parent=299 // pred_check_branch
              %734 = sbr.rel (0) target = $region315
            $region314: #{tpu_custom_call.1} parent=299 // pred_region
              %s736 = ssub.s32 2, 1
              loop: start=0, step=1, limit=1
              $region316: #{tpu_custom_call.1} parent=314 // loop_pre_header
                _
              $region317: #{tpu_custom_call.1} parent=314 // loop_header
                %s738 = sphi 0, %s742
                %p739 = scmp.ge.s32.totalorder %s738, 1
                %s743 = sphi %s713, %s713
                %s744 = sphi %s715, %s715
              $region318: #{tpu_custom_call.1} parent=314 // loop_header_branch
                %741 = sbr.rel (%p739) target = $region322
              $region319: #{tpu_custom_call.1} parent=314 // loop_body
                %v745 = vld [vmem:[%s743] sm:%s736]
                %746 = vst [vmem:[%s744] sm:%s736] %v745
              $region320: #{tpu_custom_call.1} parent=314 // loop_footer
                %s742 = sadd.s32 1, %s738
              $region321: #{tpu_custom_call.1} parent=314 // loop_footer_branch
                %737 = sbr.rel target = $region317
              $region322: #{tpu_custom_call.1} parent=314 // loop_exit
                _
            $region315: #{tpu_custom_call.1} parent=299 // pred_fallthru
              _
          $region300: #{tpu_custom_call.1} parent=295 // pred_fallthru
            _
          // Predicated region
          $region301: #{tpu_custom_call.1} parent=295 // pred_check
            _
          $region302: #{tpu_custom_call.1} parent=295 // pred_check_branch
            %720 = sbr.rel (0) target = $region304
          $region303: #{tpu_custom_call.1} parent=295 // pred_region
            %s722 = ssub.s32 2, 1
            loop: start=0, step=1, limit=1
            $region305: #{tpu_custom_call.1} parent=303 // loop_pre_header
              _
            $region306: #{tpu_custom_call.1} parent=303 // loop_header
              %s724 = sphi 0, %s728
              %p725 = scmp.ge.s32.totalorder %s724, 1
              %s729 = sphi %s713, %s713
              %s730 = sphi %s715, %s715
            $region307: #{tpu_custom_call.1} parent=303 // loop_header_branch
              %727 = sbr.rel (%p725) target = $region311
            $region308: #{tpu_custom_call.1} parent=303 // loop_body
              %v731 = vld [vmem:[%s729] sm:%s722]
              %732 = vst [vmem:[%s730] sm:%s722] %v731
            $region309: #{tpu_custom_call.1} parent=303 // loop_footer
              %s728 = sadd.s32 1, %s724
            $region310: #{tpu_custom_call.1} parent=303 // loop_footer_branch
              %723 = sbr.rel target = $region306
            $region311: #{tpu_custom_call.1} parent=303 // loop_exit
              _
          $region304: #{tpu_custom_call.1} parent=295 // pred_fallthru
            _
          // Predicated region
          $region323: #{tpu_custom_call.1} parent=295 // pred_check
            _
          $region324: #{tpu_custom_call.1} parent=295 // pred_check_branch
            %749 = sbr.rel (0) target = $region326
          $region325: #{tpu_custom_call.1} parent=295 // pred_region
            %750 = vsyncadd %s716, 16
          $region326: #{tpu_custom_call.1} parent=295 // pred_fallthru
            _
          %s751 = sadd.s32 %s704, 1
          %s752 = sshra.s32 %s751, 7
          %s753 = sand.u32 %s751, 127
          %s754 = sadd.s32 %s752, %s702
          %s755 = smul.u32 %s754, 128
          %s756 = sshra.s32 %s751, 7
          %s757 = sand.u32 %s751, 127
          %s758 = sadd.s32 %s755, %s757
          %s759 = sld [smem:[#allocation5 + %s758]]
          %s760 = scalar_lea.vmem %s1, %s759
          %s761 = sadd.s32 1, %s714
          %s762 = scalar_lea.vmem [#allocation2], %s761
          // Predicated region
          $region327: #{tpu_custom_call.1} parent=295 // pred_check
            _
          $region328: #{tpu_custom_call.1} parent=295 // pred_check_branch
            %764 = sbr.rel target = $region330
          $region329: #{tpu_custom_call.1} parent=295 // pred_region
            // Predicated region
            $region342: #{tpu_custom_call.1} parent=329 // pred_check
              _
            $region343: #{tpu_custom_call.1} parent=329 // pred_check_branch
              %780 = sbr.rel (0) target = $region345
            $region344: #{tpu_custom_call.1} parent=329 // pred_region
              %s782 = ssub.s32 2, 1
              loop: start=0, step=1, limit=1
              $region346: #{tpu_custom_call.1} parent=344 // loop_pre_header
                _
              $region347: #{tpu_custom_call.1} parent=344 // loop_header
                %s784 = sphi 0, %s788
                %p785 = scmp.ge.s32.totalorder %s784, 1
                %s789 = sphi %s760, %s760
                %s790 = sphi %s762, %s762
              $region348: #{tpu_custom_call.1} parent=344 // loop_header_branch
                %787 = sbr.rel (%p785) target = $region352
              $region349: #{tpu_custom_call.1} parent=344 // loop_body
                %v791 = vld [vmem:[%s789] sm:%s782]
                %792 = vst [vmem:[%s790] sm:%s782] %v791
              $region350: #{tpu_custom_call.1} parent=344 // loop_footer
                %s788 = sadd.s32 1, %s784
              $region351: #{tpu_custom_call.1} parent=344 // loop_footer_branch
                %783 = sbr.rel target = $region347
              $region352: #{tpu_custom_call.1} parent=344 // loop_exit
                _
            $region345: #{tpu_custom_call.1} parent=329 // pred_fallthru
              _
          $region330: #{tpu_custom_call.1} parent=295 // pred_fallthru
            _
          // Predicated region
          $region331: #{tpu_custom_call.1} parent=295 // pred_check
            _
          $region332: #{tpu_custom_call.1} parent=295 // pred_check_branch
            %766 = sbr.rel (0) target = $region334
          $region333: #{tpu_custom_call.1} parent=295 // pred_region
            %s768 = ssub.s32 2, 1
            loop: start=0, step=1, limit=1
            $region335: #{tpu_custom_call.1} parent=333 // loop_pre_header
              _
            $region336: #{tpu_custom_call.1} parent=333 // loop_header
              %s770 = sphi 0, %s774
              %p771 = scmp.ge.s32.totalorder %s770, 1
              %s775 = sphi %s760, %s760
              %s776 = sphi %s762, %s762
            $region337: #{tpu_custom_call.1} parent=333 // loop_header_branch
              %773 = sbr.rel (%p771) target = $region341
            $region338: #{tpu_custom_call.1} parent=333 // loop_body
              %v777 = vld [vmem:[%s775] sm:%s768]
              %778 = vst [vmem:[%s776] sm:%s768] %v777
            $region339: #{tpu_custom_call.1} parent=333 // loop_footer
              %s774 = sadd.s32 1, %s770
            $region340: #{tpu_custom_call.1} parent=333 // loop_footer_branch
              %769 = sbr.rel target = $region336
            $region341: #{tpu_custom_call.1} parent=333 // loop_exit
              _
          $region334: #{tpu_custom_call.1} parent=295 // pred_fallthru
            _
          // Predicated region
          $region353: #{tpu_custom_call.1} parent=295 // pred_check
            _
          $region354: #{tpu_custom_call.1} parent=295 // pred_check_branch
            %795 = sbr.rel (0) target = $region356
          $region355: #{tpu_custom_call.1} parent=295 // pred_region
            %796 = vsyncadd %s716, 16
          $region356: #{tpu_custom_call.1} parent=295 // pred_fallthru
            _
          %s797 = sadd.s32 %s704, 2
          %s798 = sshra.s32 %s797, 7
          %s799 = sand.u32 %s797, 127
          %s800 = sadd.s32 %s798, %s702
          %s801 = smul.u32 %s800, 128
          %s802 = sshra.s32 %s797, 7
          %s803 = sand.u32 %s797, 127
          %s804 = sadd.s32 %s801, %s803
          %s805 = sld [smem:[#allocation5 + %s804]]
          %s806 = scalar_lea.vmem %s1, %s805
          %s807 = sadd.s32 2, %s714
          %s808 = scalar_lea.vmem [#allocation2], %s807
          // Predicated region
          $region357: #{tpu_custom_call.1} parent=295 // pred_check
            _
          $region358: #{tpu_custom_call.1} parent=295 // pred_check_branch
            %810 = sbr.rel target = $region360
          $region359: #{tpu_custom_call.1} parent=295 // pred_region
            // Predicated region
            $region372: #{tpu_custom_call.1} parent=359 // pred_check
              _
            $region373: #{tpu_custom_call.1} parent=359 // pred_check_branch
              %826 = sbr.rel (0) target = $region375
            $region374: #{tpu_custom_call.1} parent=359 // pred_region
              %s828 = ssub.s32 2, 1
              loop: start=0, step=1, limit=1
              $region376: #{tpu_custom_call.1} parent=374 // loop_pre_header
                _
              $region377: #{tpu_custom_call.1} parent=374 // loop_header
                %s830 = sphi 0, %s834
                %p831 = scmp.ge.s32.totalorder %s830, 1
                %s835 = sphi %s806, %s806
                %s836 = sphi %s808, %s808
              $region378: #{tpu_custom_call.1} parent=374 // loop_header_branch
                %833 = sbr.rel (%p831) target = $region382
              $region379: #{tpu_custom_call.1} parent=374 // loop_body
                %v837 = vld [vmem:[%s835] sm:%s828]
                %838 = vst [vmem:[%s836] sm:%s828] %v837
              $region380: #{tpu_custom_call.1} parent=374 // loop_footer
                %s834 = sadd.s32 1, %s830
              $region381: #{tpu_custom_call.1} parent=374 // loop_footer_branch
                %829 = sbr.rel target = $region377
              $region382: #{tpu_custom_call.1} parent=374 // loop_exit
                _
            $region375: #{tpu_custom_call.1} parent=359 // pred_fallthru
              _
          $region360: #{tpu_custom_call.1} parent=295 // pred_fallthru
            _
          // Predicated region
          $region361: #{tpu_custom_call.1} parent=295 // pred_check
            _
          $region362: #{tpu_custom_call.1} parent=295 // pred_check_branch
            %812 = sbr.rel (0) target = $region364
          $region363: #{tpu_custom_call.1} parent=295 // pred_region
            %s814 = ssub.s32 2, 1
            loop: start=0, step=1, limit=1
            $region365: #{tpu_custom_call.1} parent=363 // loop_pre_header
              _
            $region366: #{tpu_custom_call.1} parent=363 // loop_header
              %s816 = sphi 0, %s820
              %p817 = scmp.ge.s32.totalorder %s816, 1
              %s821 = sphi %s806, %s806
              %s822 = sphi %s808, %s808
            $region367: #{tpu_custom_call.1} parent=363 // loop_header_branch
              %819 = sbr.rel (%p817) target = $region371
            $region368: #{tpu_custom_call.1} parent=363 // loop_body
              %v823 = vld [vmem:[%s821] sm:%s814]
              %824 = vst [vmem:[%s822] sm:%s814] %v823
            $region369: #{tpu_custom_call.1} parent=363 // loop_footer
              %s820 = sadd.s32 1, %s816
            $region370: #{tpu_custom_call.1} parent=363 // loop_footer_branch
              %815 = sbr.rel target = $region366
            $region371: #{tpu_custom_call.1} parent=363 // loop_exit
              _
          $region364: #{tpu_custom_call.1} parent=295 // pred_fallthru
            _
          // Predicated region
          $region383: #{tpu_custom_call.1} parent=295 // pred_check
            _
          $region384: #{tpu_custom_call.1} parent=295 // pred_check_branch
            %841 = sbr.rel (0) target = $region386
          $region385: #{tpu_custom_call.1} parent=295 // pred_region
            %842 = vsyncadd %s716, 16
          $region386: #{tpu_custom_call.1} parent=295 // pred_fallthru
            _
          %s843 = sadd.s32 %s704, 3
          %s844 = sshra.s32 %s843, 7
          %s845 = sand.u32 %s843, 127
          %s846 = sadd.s32 %s844, %s702
          %s847 = smul.u32 %s846, 128
          %s848 = sshra.s32 %s843, 7
          %s849 = sand.u32 %s843, 127
          %s850 = sadd.s32 %s847, %s849
          %s851 = sld [smem:[#allocation5 + %s850]]
          %s852 = scalar_lea.vmem %s1, %s851
          %s853 = sadd.s32 3, %s714
          %s854 = scalar_lea.vmem [#allocation2], %s853
          // Predicated region
          $region387: #{tpu_custom_call.1} parent=295 // pred_check
            _
          $region388: #{tpu_custom_call.1} parent=295 // pred_check_branch
            %856 = sbr.rel target = $region390
          $region389: #{tpu_custom_call.1} parent=295 // pred_region
            // Predicated region
            $region402: #{tpu_custom_call.1} parent=389 // pred_check
              _
            $region403: #{tpu_custom_call.1} parent=389 // pred_check_branch
              %872 = sbr.rel (0) target = $region405
            $region404: #{tpu_custom_call.1} parent=389 // pred_region
              %s874 = ssub.s32 2, 1
              loop: start=0, step=1, limit=1
              $region406: #{tpu_custom_call.1} parent=404 // loop_pre_header
                _
              $region407: #{tpu_custom_call.1} parent=404 // loop_header
                %s876 = sphi 0, %s880
                %p877 = scmp.ge.s32.totalorder %s876, 1
                %s881 = sphi %s852, %s852
                %s882 = sphi %s854, %s854
              $region408: #{tpu_custom_call.1} parent=404 // loop_header_branch
                %879 = sbr.rel (%p877) target = $region412
              $region409: #{tpu_custom_call.1} parent=404 // loop_body
                %v883 = vld [vmem:[%s881] sm:%s874]
                %884 = vst [vmem:[%s882] sm:%s874] %v883
              $region410: #{tpu_custom_call.1} parent=404 // loop_footer
                %s880 = sadd.s32 1, %s876
              $region411: #{tpu_custom_call.1} parent=404 // loop_footer_branch
                %875 = sbr.rel target = $region407
              $region412: #{tpu_custom_call.1} parent=404 // loop_exit
                _
            $region405: #{tpu_custom_call.1} parent=389 // pred_fallthru
              _
          $region390: #{tpu_custom_call.1} parent=295 // pred_fallthru
            _
          // Predicated region
          $region391: #{tpu_custom_call.1} parent=295 // pred_check
            _
          $region392: #{tpu_custom_call.1} parent=295 // pred_check_branch
            %858 = sbr.rel (0) target = $region394
          $region393: #{tpu_custom_call.1} parent=295 // pred_region
            %s860 = ssub.s32 2, 1
            loop: start=0, step=1, limit=1
            $region395: #{tpu_custom_call.1} parent=393 // loop_pre_header
              _
            $region396: #{tpu_custom_call.1} parent=393 // loop_header
              %s862 = sphi 0, %s866
              %p863 = scmp.ge.s32.totalorder %s862, 1
              %s867 = sphi %s852, %s852
              %s868 = sphi %s854, %s854
            $region397: #{tpu_custom_call.1} parent=393 // loop_header_branch
              %865 = sbr.rel (%p863) target = $region401
            $region398: #{tpu_custom_call.1} parent=393 // loop_body
              %v869 = vld [vmem:[%s867] sm:%s860]
              %870 = vst [vmem:[%s868] sm:%s860] %v869
            $region399: #{tpu_custom_call.1} parent=393 // loop_footer
              %s866 = sadd.s32 1, %s862
            $region400: #{tpu_custom_call.1} parent=393 // loop_footer_branch
              %861 = sbr.rel target = $region396
            $region401: #{tpu_custom_call.1} parent=393 // loop_exit
              _
          $region394: #{tpu_custom_call.1} parent=295 // pred_fallthru
            _
          // Predicated region
          $region413: #{tpu_custom_call.1} parent=295 // pred_check
            _
          $region414: #{tpu_custom_call.1} parent=295 // pred_check_branch
            %887 = sbr.rel (0) target = $region416
          $region415: #{tpu_custom_call.1} parent=295 // pred_region
            %888 = vsyncadd %s716, 16
          $region416: #{tpu_custom_call.1} parent=295 // pred_fallthru
            _
          %s889 = sadd.s32 %s704, 4
          %s890 = sshra.s32 %s889, 7
          %s891 = sand.u32 %s889, 127
          %s892 = sadd.s32 %s890, %s702
          %s893 = smul.u32 %s892, 128
          %s894 = sshra.s32 %s889, 7
          %s895 = sand.u32 %s889, 127
          %s896 = sadd.s32 %s893, %s895
          %s897 = sld [smem:[#allocation5 + %s896]]
          %s898 = scalar_lea.vmem %s1, %s897
          %s899 = sadd.s32 4, %s714
          %s900 = scalar_lea.vmem [#allocation2], %s899
          // Predicated region
          $region417: #{tpu_custom_call.1} parent=295 // pred_check
            _
          $region418: #{tpu_custom_call.1} parent=295 // pred_check_branch
            %902 = sbr.rel target = $region420
          $region419: #{tpu_custom_call.1} parent=295 // pred_region
            // Predicated region
            $region432: #{tpu_custom_call.1} parent=419 // pred_check
              _
            $region433: #{tpu_custom_call.1} parent=419 // pred_check_branch
              %918 = sbr.rel (0) target = $region435
            $region434: #{tpu_custom_call.1} parent=419 // pred_region
              %s920 = ssub.s32 2, 1
              loop: start=0, step=1, limit=1
              $region436: #{tpu_custom_call.1} parent=434 // loop_pre_header
                _
              $region437: #{tpu_custom_call.1} parent=434 // loop_header
                %s922 = sphi 0, %s926
                %p923 = scmp.ge.s32.totalorder %s922, 1
                %s927 = sphi %s898, %s898
                %s928 = sphi %s900, %s900
              $region438: #{tpu_custom_call.1} parent=434 // loop_header_branch
                %925 = sbr.rel (%p923) target = $region442
              $region439: #{tpu_custom_call.1} parent=434 // loop_body
                %v929 = vld [vmem:[%s927] sm:%s920]
                %930 = vst [vmem:[%s928] sm:%s920] %v929
              $region440: #{tpu_custom_call.1} parent=434 // loop_footer
                %s926 = sadd.s32 1, %s922
              $region441: #{tpu_custom_call.1} parent=434 // loop_footer_branch
                %921 = sbr.rel target = $region437
              $region442: #{tpu_custom_call.1} parent=434 // loop_exit
                _
            $region435: #{tpu_custom_call.1} parent=419 // pred_fallthru
              _
          $region420: #{tpu_custom_call.1} parent=295 // pred_fallthru
            _
          // Predicated region
          $region421: #{tpu_custom_call.1} parent=295 // pred_check
            _
          $region422: #{tpu_custom_call.1} parent=295 // pred_check_branch
            %904 = sbr.rel (0) target = $region424
          $region423: #{tpu_custom_call.1} parent=295 // pred_region
            %s906 = ssub.s32 2, 1
            loop: start=0, step=1, limit=1
            $region425: #{tpu_custom_call.1} parent=423 // loop_pre_header
              _
            $region426: #{tpu_custom_call.1} parent=423 // loop_header
              %s908 = sphi 0, %s912
              %p909 = scmp.ge.s32.totalorder %s908, 1
              %s913 = sphi %s898, %s898
              %s914 = sphi %s900, %s900
            $region427: #{tpu_custom_call.1} parent=423 // loop_header_branch
              %911 = sbr.rel (%p909) target = $region431
            $region428: #{tpu_custom_call.1} parent=423 // loop_body
              %v915 = vld [vmem:[%s913] sm:%s906]
              %916 = vst [vmem:[%s914] sm:%s906] %v915
            $region429: #{tpu_custom_call.1} parent=423 // loop_footer
              %s912 = sadd.s32 1, %s908
            $region430: #{tpu_custom_call.1} parent=423 // loop_footer_branch
              %907 = sbr.rel target = $region426
            $region431: #{tpu_custom_call.1} parent=423 // loop_exit
              _
          $region424: #{tpu_custom_call.1} parent=295 // pred_fallthru
            _
          // Predicated region
          $region443: #{tpu_custom_call.1} parent=295 // pred_check
            _
          $region444: #{tpu_custom_call.1} parent=295 // pred_check_branch
            %933 = sbr.rel (0) target = $region446
          $region445: #{tpu_custom_call.1} parent=295 // pred_region
            %934 = vsyncadd %s716, 16
          $region446: #{tpu_custom_call.1} parent=295 // pred_fallthru
            _
          %s935 = sadd.s32 %s704, 5
          %s936 = sshra.s32 %s935, 7
          %s937 = sand.u32 %s935, 127
          %s938 = sadd.s32 %s936, %s702
          %s939 = smul.u32 %s938, 128
          %s940 = sshra.s32 %s935, 7
          %s941 = sand.u32 %s935, 127
          %s942 = sadd.s32 %s939, %s941
          %s943 = sld [smem:[#allocation5 + %s942]]
          %s944 = scalar_lea.vmem %s1, %s943
          %s945 = sadd.s32 5, %s714
          %s946 = scalar_lea.vmem [#allocation2], %s945
          // Predicated region
          $region447: #{tpu_custom_call.1} parent=295 // pred_check
            _
          $region448: #{tpu_custom_call.1} parent=295 // pred_check_branch
            %948 = sbr.rel target = $region450
          $region449: #{tpu_custom_call.1} parent=295 // pred_region
            // Predicated region
            $region462: #{tpu_custom_call.1} parent=449 // pred_check
              _
            $region463: #{tpu_custom_call.1} parent=449 // pred_check_branch
              %964 = sbr.rel (0) target = $region465
            $region464: #{tpu_custom_call.1} parent=449 // pred_region
              %s966 = ssub.s32 2, 1
              loop: start=0, step=1, limit=1
              $region466: #{tpu_custom_call.1} parent=464 // loop_pre_header
                _
              $region467: #{tpu_custom_call.1} parent=464 // loop_header
                %s968 = sphi 0, %s972
                %p969 = scmp.ge.s32.totalorder %s968, 1
                %s973 = sphi %s944, %s944
                %s974 = sphi %s946, %s946
              $region468: #{tpu_custom_call.1} parent=464 // loop_header_branch
                %971 = sbr.rel (%p969) target = $region472
              $region469: #{tpu_custom_call.1} parent=464 // loop_body
                %v975 = vld [vmem:[%s973] sm:%s966]
                %976 = vst [vmem:[%s974] sm:%s966] %v975
              $region470: #{tpu_custom_call.1} parent=464 // loop_footer
                %s972 = sadd.s32 1, %s968
              $region471: #{tpu_custom_call.1} parent=464 // loop_footer_branch
                %967 = sbr.rel target = $region467
              $region472: #{tpu_custom_call.1} parent=464 // loop_exit
                _
            $region465: #{tpu_custom_call.1} parent=449 // pred_fallthru
              _
          $region450: #{tpu_custom_call.1} parent=295 // pred_fallthru
            _
          // Predicated region
          $region451: #{tpu_custom_call.1} parent=295 // pred_check
            _
          $region452: #{tpu_custom_call.1} parent=295 // pred_check_branch
            %950 = sbr.rel (0) target = $region454
          $region453: #{tpu_custom_call.1} parent=295 // pred_region
            %s952 = ssub.s32 2, 1
            loop: start=0, step=1, limit=1
            $region455: #{tpu_custom_call.1} parent=453 // loop_pre_header
              _
            $region456: #{tpu_custom_call.1} parent=453 // loop_header
              %s954 = sphi 0, %s958
              %p955 = scmp.ge.s32.totalorder %s954, 1
              %s959 = sphi %s944, %s944
              %s960 = sphi %s946, %s946
            $region457: #{tpu_custom_call.1} parent=453 // loop_header_branch
              %957 = sbr.rel (%p955) target = $region461
            $region458: #{tpu_custom_call.1} parent=453 // loop_body
              %v961 = vld [vmem:[%s959] sm:%s952]
              %962 = vst [vmem:[%s960] sm:%s952] %v961
            $region459: #{tpu_custom_call.1} parent=453 // loop_footer
              %s958 = sadd.s32 1, %s954
            $region460: #{tpu_custom_call.1} parent=453 // loop_footer_branch
              %953 = sbr.rel target = $region456
            $region461: #{tpu_custom_call.1} parent=453 // loop_exit
              _
          $region454: #{tpu_custom_call.1} parent=295 // pred_fallthru
            _
          // Predicated region
          $region473: #{tpu_custom_call.1} parent=295 // pred_check
            _
          $region474: #{tpu_custom_call.1} parent=295 // pred_check_branch
            %979 = sbr.rel (0) target = $region476
          $region475: #{tpu_custom_call.1} parent=295 // pred_region
            %980 = vsyncadd %s716, 16
          $region476: #{tpu_custom_call.1} parent=295 // pred_fallthru
            _
          %s981 = sadd.s32 %s704, 6
          %s982 = sshra.s32 %s981, 7
          %s983 = sand.u32 %s981, 127
          %s984 = sadd.s32 %s982, %s702
          %s985 = smul.u32 %s984, 128
          %s986 = sshra.s32 %s981, 7
          %s987 = sand.u32 %s981, 127
          %s988 = sadd.s32 %s985, %s987
          %s989 = sld [smem:[#allocation5 + %s988]]
          %s990 = scalar_lea.vmem %s1, %s989
          %s991 = sadd.s32 6, %s714
          %s992 = scalar_lea.vmem [#allocation2], %s991
          // Predicated region
          $region477: #{tpu_custom_call.1} parent=295 // pred_check
            _
          $region478: #{tpu_custom_call.1} parent=295 // pred_check_branch
            %994 = sbr.rel target = $region480
          $region479: #{tpu_custom_call.1} parent=295 // pred_region
            // Predicated region
            $region492: #{tpu_custom_call.1} parent=479 // pred_check
              _
            $region493: #{tpu_custom_call.1} parent=479 // pred_check_branch
              %1010 = sbr.rel (0) target = $region495
            $region494: #{tpu_custom_call.1} parent=479 // pred_region
              %s1012 = ssub.s32 2, 1
              loop: start=0, step=1, limit=1
              $region496: #{tpu_custom_call.1} parent=494 // loop_pre_header
                _
              $region497: #{tpu_custom_call.1} parent=494 // loop_header
                %s1014 = sphi 0, %s1018
                %p1015 = scmp.ge.s32.totalorder %s1014, 1
                %s1019 = sphi %s990, %s990
                %s1020 = sphi %s992, %s992
              $region498: #{tpu_custom_call.1} parent=494 // loop_header_branch
                %1017 = sbr.rel (%p1015) target = $region502
              $region499: #{tpu_custom_call.1} parent=494 // loop_body
                %v1021 = vld [vmem:[%s1019] sm:%s1012]
                %1022 = vst [vmem:[%s1020] sm:%s1012] %v1021
              $region500: #{tpu_custom_call.1} parent=494 // loop_footer
                %s1018 = sadd.s32 1, %s1014
              $region501: #{tpu_custom_call.1} parent=494 // loop_footer_branch
                %1013 = sbr.rel target = $region497
              $region502: #{tpu_custom_call.1} parent=494 // loop_exit
                _
            $region495: #{tpu_custom_call.1} parent=479 // pred_fallthru
              _
          $region480: #{tpu_custom_call.1} parent=295 // pred_fallthru
            _
          // Predicated region
          $region481: #{tpu_custom_call.1} parent=295 // pred_check
            _
          $region482: #{tpu_custom_call.1} parent=295 // pred_check_branch
            %996 = sbr.rel (0) target = $region484
          $region483: #{tpu_custom_call.1} parent=295 // pred_region
            %s998 = ssub.s32 2, 1
            loop: start=0, step=1, limit=1
            $region485: #{tpu_custom_call.1} parent=483 // loop_pre_header
              _
            $region486: #{tpu_custom_call.1} parent=483 // loop_header
              %s1000 = sphi 0, %s1004
              %p1001 = scmp.ge.s32.totalorder %s1000, 1
              %s1005 = sphi %s990, %s990
              %s1006 = sphi %s992, %s992
            $region487: #{tpu_custom_call.1} parent=483 // loop_header_branch
              %1003 = sbr.rel (%p1001) target = $region491
            $region488: #{tpu_custom_call.1} parent=483 // loop_body
              %v1007 = vld [vmem:[%s1005] sm:%s998]
              %1008 = vst [vmem:[%s1006] sm:%s998] %v1007
            $region489: #{tpu_custom_call.1} parent=483 // loop_footer
              %s1004 = sadd.s32 1, %s1000
            $region490: #{tpu_custom_call.1} parent=483 // loop_footer_branch
              %999 = sbr.rel target = $region486
            $region491: #{tpu_custom_call.1} parent=483 // loop_exit
              _
          $region484: #{tpu_custom_call.1} parent=295 // pred_fallthru
            _
          // Predicated region
          $region503: #{tpu_custom_call.1} parent=295 // pred_check
            _
          $region504: #{tpu_custom_call.1} parent=295 // pred_check_branch
            %1025 = sbr.rel (0) target = $region506
          $region505: #{tpu_custom_call.1} parent=295 // pred_region
            %1026 = vsyncadd %s716, 16
          $region506: #{tpu_custom_call.1} parent=295 // pred_fallthru
            _
          %s1027 = sadd.s32 %s704, 7
          %s1028 = sshra.s32 %s1027, 7
          %s1029 = sand.u32 %s1027, 127
          %s1030 = sadd.s32 %s1028, %s702
          %s1031 = smul.u32 %s1030, 128
          %s1032 = sshra.s32 %s1027, 7
          %s1033 = sand.u32 %s1027, 127
          %s1034 = sadd.s32 %s1031, %s1033
          %s1035 = sld [smem:[#allocation5 + %s1034]]
          %s1036 = scalar_lea.vmem %s1, %s1035
          %s1037 = sadd.s32 7, %s714
          %s1038 = scalar_lea.vmem [#allocation2], %s1037
          // Predicated region
          $region507: #{tpu_custom_call.1} parent=295 // pred_check
            _
          $region508: #{tpu_custom_call.1} parent=295 // pred_check_branch
            %1040 = sbr.rel target = $region510
          $region509: #{tpu_custom_call.1} parent=295 // pred_region
            // Predicated region
            $region522: #{tpu_custom_call.1} parent=509 // pred_check
              _
            $region523: #{tpu_custom_call.1} parent=509 // pred_check_branch
              %1056 = sbr.rel (0) target = $region525
            $region524: #{tpu_custom_call.1} parent=509 // pred_region
              %s1058 = ssub.s32 2, 1
              loop: start=0, step=1, limit=1
              $region526: #{tpu_custom_call.1} parent=524 // loop_pre_header
                _
              $region527: #{tpu_custom_call.1} parent=524 // loop_header
                %s1060 = sphi 0, %s1064
                %p1061 = scmp.ge.s32.totalorder %s1060, 1
                %s1065 = sphi %s1036, %s1036
                %s1066 = sphi %s1038, %s1038
              $region528: #{tpu_custom_call.1} parent=524 // loop_header_branch
                %1063 = sbr.rel (%p1061) target = $region532
              $region529: #{tpu_custom_call.1} parent=524 // loop_body
                %v1067 = vld [vmem:[%s1065] sm:%s1058]
                %1068 = vst [vmem:[%s1066] sm:%s1058] %v1067
              $region530: #{tpu_custom_call.1} parent=524 // loop_footer
                %s1064 = sadd.s32 1, %s1060
              $region531: #{tpu_custom_call.1} parent=524 // loop_footer_branch
                %1059 = sbr.rel target = $region527
              $region532: #{tpu_custom_call.1} parent=524 // loop_exit
                _
            $region525: #{tpu_custom_call.1} parent=509 // pred_fallthru
              _
          $region510: #{tpu_custom_call.1} parent=295 // pred_fallthru
            _
          // Predicated region
          $region511: #{tpu_custom_call.1} parent=295 // pred_check
            _
          $region512: #{tpu_custom_call.1} parent=295 // pred_check_branch
            %1042 = sbr.rel (0) target = $region514
          $region513: #{tpu_custom_call.1} parent=295 // pred_region
            %s1044 = ssub.s32 2, 1
            loop: start=0, step=1, limit=1
            $region515: #{tpu_custom_call.1} parent=513 // loop_pre_header
              _
            $region516: #{tpu_custom_call.1} parent=513 // loop_header
              %s1046 = sphi 0, %s1050
              %p1047 = scmp.ge.s32.totalorder %s1046, 1
              %s1051 = sphi %s1036, %s1036
              %s1052 = sphi %s1038, %s1038
            $region517: #{tpu_custom_call.1} parent=513 // loop_header_branch
              %1049 = sbr.rel (%p1047) target = $region521
            $region518: #{tpu_custom_call.1} parent=513 // loop_body
              %v1053 = vld [vmem:[%s1051] sm:%s1044]
              %1054 = vst [vmem:[%s1052] sm:%s1044] %v1053
            $region519: #{tpu_custom_call.1} parent=513 // loop_footer
              %s1050 = sadd.s32 1, %s1046
            $region520: #{tpu_custom_call.1} parent=513 // loop_footer_branch
              %1045 = sbr.rel target = $region516
            $region521: #{tpu_custom_call.1} parent=513 // loop_exit
              _
          $region514: #{tpu_custom_call.1} parent=295 // pred_fallthru
            _
          // Predicated region
          $region533: #{tpu_custom_call.1} parent=295 // pred_check
            _
          $region534: #{tpu_custom_call.1} parent=295 // pred_check_branch
            %1071 = sbr.rel (0) target = $region536
          $region535: #{tpu_custom_call.1} parent=295 // pred_region
            %1072 = vsyncadd %s716, 16
          $region536: #{tpu_custom_call.1} parent=295 // pred_fallthru
            _
        $region296: #{tpu_custom_call.1} parent=39 // pred_fallthru
          _
        %v1073 = vld [vmem:[%s311] sm:$0xff]
        %v1074 = vlaneseq
        %v1075 = vand.u32 %v1074, 127
        %1076 = vset.pattern.permute.xlu0 0
        %1077 = vperm.xlu0 %1076, %v1073
        %v1078 = vpop.permute.xlu0 %1077
        %vm1079 = vcmp.eq.s32.totalorder %v1078, %v1075
        %v1080 = vsel %vm1079, 1, 0
        %v1081 = vcvt.s32.f32 %v1080
        %v1082 = vld [vmem:[#allocation9] sm:$0x3]
        %vm1083 = vcmask 15360
        %v1085 = vsel %vm1083, %v1081, 0
        %vm1087 = vcmask 1041408
        %v1089 = vsel %vm1087, %v1082, 0
        %1091 = vmatpush.msra.mxu0 0.0
        %1092 = vmatpush.msra.mxu0 0.0
        %1093 = vmatpush.msra.mxu0 0.0
        %1094 = vmatpush.msra.mxu0 0.0
        %1095 = vmatpush.msra.mxu0 0.0
        %1096 = vmatpush.msra.mxu0 0.0
        %1097 = vmatpush.msra.mxu0 0.0
        %1098 = vmatpush.msra.mxu0 0.0
        %1099 = vmatpush.msra.mxu0 0.0
        %1100 = vmatpush.msra.mxu0 0.0
        %1101 = vmatpush.msra.mxu0 0.0
        %1102 = vmatpush.msra.mxu0 0.0
        %1103 = vmatpush.msra.mxu0 0.0
        %1104 = vmatpush.msra.mxu0 0.0
        %1105 = vmatpush.msra.mxu0 0.0
        %1106 = vmatpush.msra.mxu0 %v1089
        %1107 = vmatmul.f32.gmra.mxu0 %v1085
        %v1108 = vpop.f32.mrf.mxu0
        %v1109 = vadd.f32 0.0, %v1108
        %1110 = vdwg.mxu0
        %v1111 = vld [vmem:[%s263] sm:$0xff]
        %v1112 = vadd.f32 %v1111, %v1109
        %s1113 = smul.u32 %s37, 8
        %s1114 = sshra.s32 %s1113, 7
        %s1115 = sand.u32 %s1113, 127
        %s1116 = sadd.s32 %s1114, %s38
        %s1117 = smul.u32 %s1116, 128
        %s1118 = sshra.s32 %s1113, 7
        %s1119 = sand.u32 %s1113, 127
        %s1120 = sadd.s32 %s1117, %s1119
        %s1121 = sld [smem:[#allocation5 + %s1120]]
        %s1122 = scalar_lea.sflag [#allocation3], %s319
        %s1123 = smul.u32 1, 1
        %s1124 = sshll.u32 %s1123, 4
        %1125 = dma.done %s1122, %s1124
        %s1126 = sadd.s32 %s1113, 1
        %s1127 = sshra.s32 %s1126, 7
        %s1128 = sand.u32 %s1126, 127
        %s1129 = sadd.s32 %s1127, %s38
        %s1130 = smul.u32 %s1129, 128
        %s1131 = sshra.s32 %s1126, 7
        %s1132 = sand.u32 %s1126, 127
        %s1133 = sadd.s32 %s1130, %s1132
        %s1134 = sld [smem:[#allocation5 + %s1133]]
        %s1135 = sshll.u32 %s1123, 4
        %1136 = dma.done %s1122, %s1135
        %s1137 = sadd.s32 %s1113, 2
        %s1138 = sshra.s32 %s1137, 7
        %s1139 = sand.u32 %s1137, 127
        %s1140 = sadd.s32 %s1138, %s38
        %s1141 = smul.u32 %s1140, 128
        %s1142 = sshra.s32 %s1137, 7
        %s1143 = sand.u32 %s1137, 127
        %s1144 = sadd.s32 %s1141, %s1143
        %s1145 = sld [smem:[#allocation5 + %s1144]]
        %s1146 = sshll.u32 %s1123, 4
        %1147 = dma.done %s1122, %s1146
        %s1148 = sadd.s32 %s1113, 3
        %s1149 = sshra.s32 %s1148, 7
        %s1150 = sand.u32 %s1148, 127
        %s1151 = sadd.s32 %s1149, %s38
        %s1152 = smul.u32 %s1151, 128
        %s1153 = sshra.s32 %s1148, 7
        %s1154 = sand.u32 %s1148, 127
        %s1155 = sadd.s32 %s1152, %s1154
        %s1156 = sld [smem:[#allocation5 + %s1155]]
        %s1157 = sshll.u32 %s1123, 4
        %1158 = dma.done %s1122, %s1157
        %s1159 = sadd.s32 %s1113, 4
        %s1160 = sshra.s32 %s1159, 7
        %s1161 = sand.u32 %s1159, 127
        %s1162 = sadd.s32 %s1160, %s38
        %s1163 = smul.u32 %s1162, 128
        %s1164 = sshra.s32 %s1159, 7
        %s1165 = sand.u32 %s1159, 127
        %s1166 = sadd.s32 %s1163, %s1165
        %s1167 = sld [smem:[#allocation5 + %s1166]]
        %s1168 = sshll.u32 %s1123, 4
        %1169 = dma.done %s1122, %s1168
        %s1170 = sadd.s32 %s1113, 5
        %s1171 = sshra.s32 %s1170, 7
        %s1172 = sand.u32 %s1170, 127
        %s1173 = sadd.s32 %s1171, %s38
        %s1174 = smul.u32 %s1173, 128
        %s1175 = sshra.s32 %s1170, 7
        %s1176 = sand.u32 %s1170, 127
        %s1177 = sadd.s32 %s1174, %s1176
        %s1178 = sld [smem:[#allocation5 + %s1177]]
        %s1179 = sshll.u32 %s1123, 4
        %1180 = dma.done %s1122, %s1179
        %s1181 = sadd.s32 %s1113, 6
        %s1182 = sshra.s32 %s1181, 7
        %s1183 = sand.u32 %s1181, 127
        %s1184 = sadd.s32 %s1182, %s38
        %s1185 = smul.u32 %s1184, 128
        %s1186 = sshra.s32 %s1181, 7
        %s1187 = sand.u32 %s1181, 127
        %s1188 = sadd.s32 %s1185, %s1187
        %s1189 = sld [smem:[#allocation5 + %s1188]]
        %s1190 = sshll.u32 %s1123, 4
        %1191 = dma.done %s1122, %s1190
        %s1192 = sadd.s32 %s1113, 7
        %s1193 = sshra.s32 %s1192, 7
        %s1194 = sand.u32 %s1192, 127
        %s1195 = sadd.s32 %s1193, %s38
        %s1196 = smul.u32 %s1195, 128
        %s1197 = sshra.s32 %s1192, 7
        %s1198 = sand.u32 %s1192, 127
        %s1199 = sadd.s32 %s1196, %s1198
        %s1200 = sld [smem:[#allocation5 + %s1199]]
        %s1201 = sshll.u32 %s1123, 4
        %1202 = dma.done %s1122, %s1201
        %s1203 = smul.u32 %s319, 8
        %s1204 = scalar_lea.vmem [#allocation2], %s1203
        %v1205 = vld [vmem:[%s1204] sm:$0xff]
        %v1206 = vadd.f32 %v1112, %v1205
        %1207 = vadd.xlane.f32.xlu0 %v1206
        %v1208 = vpop.xlane.xlu0 %1207
        %v1209 = vrcp.pop 128.0
        %v1210 = vmul.f32 128.0, %v1209
        %v1211 = vsub.f32 1.0, %v1210
        %v1212 = vmul.f32 %v1209, %v1211
        %v1213 = vadd.f32 %v1209, %v1212
        %vm1214 = vweird.f32 %v1209
        %v1215 = vsel %vm1214, %v1209, %v1213
        %v1216 = vmul.f32 %v1208, %v1215
        %v1217 = vsub.f32 %v1206, %v1216
        %v1218 = vmul.f32 %v1217, %v1217
        %1219 = vadd.xlane.f32.xlu0 %v1218
        %v1220 = vpop.xlane.xlu0 %1219
        %v1221 = vmul.f32 %v1220, %v1215
        %v1222 = vadd.f32 %v1221, 1e-05
        %v1223 = vrsqrt.pop %v1222
        %v1224 = vmul.f32 %v1223, %v1222
        %v1225 = vmul.f32 %v1224, %v1223
        %v1226 = vmul.f32 0.5, %v1225
        %v1227 = vsub.f32 1.5, %v1226
        %v1228 = vmul.f32 %v1223, %v1227
        %vm1229 = vweird.f32 %v1222
        %vm1230 = vweird.f32 %v1223
        %vm1231 = vmor %vm1229, %vm1230
        %v1232 = vsel %vm1231, %v1223, %v1228
        %v1233 = vmul.f32 %v1217, %v1232
        %v1234 = vld [vmem:[%s5] sm:$0x1]
        %v1236 = vperm.slane %v1234, 0
        %v1238 = vmul.f32 %v1233, %v1236
        %v1239 = vld [vmem:[%s6] sm:$0x1]
        %v1241 = vperm.slane %v1239, 0
        %v1243 = vadd.f32 %v1238, %v1241
        %1244 = vst [vmem:[%s303] sm:$0xff] %v1243
        %s1245 = sand.u32 %s172, 1
        %s1246 = scalar_lea.sflag [#allocation8], %s1245
        %s1247 = sand.u32 %s172, 1
        %s1248 = smul.addr %s1247, 8
        %s1249 = scalar_lea.vmem [#allocation11], %s1248
        // Predicated region
        $region537: #{tpu_custom_call.1} parent=39 // pred_check
          %p1250 = pneg %p182
        $region538: #{tpu_custom_call.1} parent=39 // pred_check_branch
          %1252 = sbr.rel (%p1250) target = $region540
        $region539: #{tpu_custom_call.1} parent=39 // pred_region
          %1254 = vsyncadd %s1246, 0
          %s1255 = smul.addr %s38, 4
          %s1256 = sadd.s32 %s37, %s1255
          %s1257 = smul.addr %s1256, 8
          %s1258 = scalar_lea.hbm %s7, %s1257
          %s1260 = sshll.u32 %s1249, 4
          %s1261 = int_to_ptr.vmem [resolvable:$true] %s1260
          %s1262 = sshll.u32 %s1258, 4
          %s1263 = int_to_ptr.hbm [resolvable:$true] %s1262
          %1265 = dma.vmem_to_hbm [thread:$0]  %s1261, 128, %s1263, %s1246
        $region540: #{tpu_custom_call.1} parent=39 // pred_fallthru
          _
      $region40: #{tpu_custom_call.1} parent=5 // pred_fallthru
        _
      %p1266 = scmp.le.s32.totalorder 2, %s28
      // Predicated region
      $region541: #{tpu_custom_call.1} parent=5 // pred_check
        %p1267 = pneg %p1266
      $region542: #{tpu_custom_call.1} parent=5 // pred_check_branch
        %1269 = sbr.rel (%p1267) target = $region544
      $region543: #{tpu_custom_call.1} parent=5 // pred_region
        %s1270 = ssub.s32 %s28, 2
        // Predicated region
        $region545: #{tpu_custom_call.1} parent=543 // pred_check
          %p1271 = pneg %p188
        $region546: #{tpu_custom_call.1} parent=543 // pred_check_branch
          %1273 = sbr.rel (%p1271) target = $region548
        $region547: #{tpu_custom_call.1} parent=543 // pred_region
          %s1274 = sand.u32 %s173, 1
          %s1275 = scalar_lea.sflag [#allocation8], %s1274
          %s1276 = sand.u32 %s173, 1
          %s1277 = smul.addr %s1276, 8
          %s1278 = scalar_lea.vmem [#allocation11], %s1277
          %1280 = dma.done %s1275, 128
        $region548: #{tpu_custom_call.1} parent=543 // pred_fallthru
          _
      $region544: #{tpu_custom_call.1} parent=5 // pred_fallthru
        _
    $region6: #{tpu_custom_call.1} parent=1 // loop_footer
      %s32 = sadd.s32 1, %s28
    $region7: #{tpu_custom_call.1} parent=1 // loop_footer_branch
      %27 = sbr.rel target = $region3
    $region8: #{tpu_custom_call.1} parent=1 // loop_exit
      _
    %1281 = vsyncpa [#allocation7], 1
    %s1282 = scalar_lea.sflag [#allocation7], 1
    %1283 = vsyncpa %s1282, 1
    %1284 = vsyncpa [#allocation10], 1
    %1285 = vsyncpa [#allocation8], 1
    %s1286 = scalar_lea.sflag [#allocation8], 1
    %1287 = vsyncpa %s1286, 1
  %1288 = vsyncmov [#allocation3]
  %s1289 = vpop.sfrf %1288
  %p1290 = scmp.eq.s32.totalorder %s1289, 0
  %p1291 = pneg %p1290
  %1293 = shalt.err (%p1291)
  %s1294 = scalar_lea.sflag [#allocation3], 1
  %1295 = vsyncmov %s1294
  %s1296 = vpop.sfrf %1295
  %p1297 = scmp.eq.s32.totalorder %s1296, 0
  %p1298 = pneg %p1297
  %1300 = shalt.err (%p1298)

</llo_original>
